<compile_context>
chip_gen: v6e
topology: v6e:2x2x1
jax: 0.10.0
libtpu: 0.0.40
codegen_flags: <defaults>
</compile_context>

<pallas_src>
import math

import jax
import jax.numpy as jnp
import numpy as np
from jax.experimental import pallas as pl
from jax.experimental.pallas import tpu as pltpu

# ---- model hyper-parameters (small, consistent with the module) ----
D_MODEL = 32                 # d_model
N_HEAD = 4                   # n_head
HEAD_DIM = D_MODEL // N_HEAD
D_FF = 4 * D_MODEL           # linear1 out / linear2 in
SEQ = 8                      # sequence length (query == key/value length here)
BATCH = 2
LN_EPS = 1e-5
SB = SEQ * BATCH             # batch-stacked row count

assert BATCH & (BATCH - 1) == 0, "bitwise batch mask assumes power-of-two batch"

# Row layout of the packed (16, D_FF) vector bundle.
_R_BQ, _R_BKV, _R_BO, _R_B1, _R_G1, _R_BE1, _R_B2, _R_G2, _R_BE2 = range(9)


def _layernorm(x, gamma, beta, eps=LN_EPS):
    mu = jnp.mean(x, axis=-1, keepdims=True)
    xc = x - mu
    var = jnp.mean(xc * xc, axis=-1, keepdims=True)
    return xc * jax.lax.rsqrt(var + eps) * gamma + beta


# ---------------- kernel ----------------

def _cross_transformer_kernel(x1_ref, x2_ref, wq_ref, wkv_ref, wo_ref,
                              w1_ref, w2_ref, vecs_ref, out_ref):
    """Whole problem (both batch elements) in one invocation, all VMEM-resident.

    x1_ref, x2_ref : (SB, D)      batch-stacked inputs, row i = (s = i // B, b = i % B)
    wq_ref         : (D, 2D)      scaled Q projection in the k-aligned columns, v-half zero
    wkv_ref        : (D, 2D)      fused K|V projection
    wo_ref         : (2D, D)      output projection; rows 0..D-1 are zero padding
    w1_ref         : (D, D_FF), w2_ref: (D_FF, D)
    vecs_ref       : (16, D_FF)   packed bias / LayerNorm vectors (rows _R_*)
    out_ref        : (SB, D)
    """
    x1 = x1_ref[...]
    x2 = x2_ref[...]
    wq = wq_ref[...]
    wkv = wkv_ref[...]
    wo = wo_ref[...]
    w1 = w1_ref[...]
    w2 = w2_ref[...]
    vecs = vecs_ref[...]

    d2 = 2 * D_MODEL
    bq = vecs[_R_BQ:_R_BQ + 1, :d2]        # (1, 2D), scaled, v-half zero
    bkv = vecs[_R_BKV:_R_BKV + 1, :d2]     # (1, 2D)  = bk | bv
    bo = vecs[_R_BO:_R_BO + 1, :D_MODEL]
    b1 = vecs[_R_B1:_R_B1 + 1, :]          # (1, D_FF)
    g1 = vecs[_R_G1:_R_G1 + 1, :D_MODEL]
    be1 = vecs[_R_BE1:_R_BE1 + 1, :D_MODEL]
    b2 = vecs[_R_B2:_R_B2 + 1, :D_MODEL]
    g2 = vecs[_R_G2:_R_G2 + 1, :D_MODEL]
    be2 = vecs[_R_BE2:_R_BE2 + 1, :D_MODEL]

    # ---- projections on the full (SB, D) slab: one matmul each ----
    q64 = jnp.dot(x1, wq, preferred_element_type=jnp.float32) + bq     # (SB, 2D)
    kv = jnp.dot(x2, wkv, preferred_element_type=jnp.float32) + bkv    # (SB, 2D) = [K | V]

    # ---- masks (compile-time-static patterns built from iota, no rem/div) ----
    lane = jax.lax.broadcasted_iota(jnp.int32, (1, d2), 1)             # (1, 2D)
    r = jax.lax.broadcasted_iota(jnp.int32, (SB, SB), 0)
    c = jax.lax.broadcasted_iota(jnp.int32, (SB, SB), 1)
    # rows i = s*B + b: same batch  <=>  low bits of i equal (BATCH is a power of two)
    same_batch = ((r ^ c) & (BATCH - 1)) == 0
    bmask = jnp.where(same_batch, jnp.float32(0.0), jnp.float32(-1e30))  # (SB, SB)

    # ---- multi-head attention, both batches at once, no lane slices ----
    acc64 = None
    for h in range(N_HEAD):                                # static unroll (4 heads)
        lo, hi = h * HEAD_DIM, (h + 1) * HEAD_DIM
        q_sel = (lane >= lo) & (lane < hi)                 # head-h columns of the K half
        v_sel = (lane >= D_MODEL + lo) & (lane < D_MODEL + hi)   # head-h columns of V half

        qh = jnp.where(q_sel, q64, 0.0)                    # (SB, 2D), nonzero only head-h K cols
        # scores: contract dim 1 of both operands (no explicit transpose);
        # zeroed columns of qh make this exactly q_h . k_h^T
        s = jax.lax.dot_general(qh, kv, (((1,), (1,)), ((), ())),
                                preferred_element_type=jnp.float32)    # (SB, SB)
        s = s + bmask
        s = s - jnp.max(s, axis=-1, keepdims=True)
        p = jnp.exp(s)
        # approx=False kept for the 1e-4 self-check; approx=True would use the EUP vrcp slot.
        p = p * pl.reciprocal(jnp.sum(p, axis=-1, keepdims=True), approx=False)

        vh = jnp.where(v_sel, kv, 0.0)                     # (SB, 2D), nonzero only head-h V cols
        contrib = jnp.dot(p, vh, preferred_element_type=jnp.float32)   # (SB, 2D)
        acc64 = contrib if acc64 is None else acc64 + contrib

    # acc64 holds the concatenated head outputs in its V-half columns; the padded
    # wo (zero rows for the K half) applies the output projection in one matmul.
    attn = jnp.dot(acc64, wo, preferred_element_type=jnp.float32) + bo  # (SB, D)

    # ---- residual + LayerNorm 1 (dropout1 == identity at inference) ----
    y = _layernorm(x1 + attn, g1, be1)

    # ---- feed-forward: linear2(relu(linear1(y))) ----
    h1 = jnp.maximum(jnp.dot(y, w1, preferred_element_type=jnp.float32) + b1, 0.0)
    ff = jnp.dot(h1, w2, preferred_element_type=jnp.float32) + b2

    # ---- residual + LayerNorm 2 ----
    out_ref[...] = _layernorm(y + ff, g2, be2)


# ---------------- parameter packing ----------------

def pack_params(params):
    """One-time structural packing of the raw parameters.

    * folds 1/sqrt(head_dim) into wq / bq
    * pads wq to (D, 2D) so Q can be contracted directly against the fused KV slab
    * fuses wk|wv into a single (D, 2D) weight and bk|bv into one (1, 2D) bias
    * pads wo to (2D, D) (zero rows for the K half of the accumulated slab)
    * packs all nine bias / LayerNorm vectors (incl. b1) into one lane-dense
      (16, D_FF) bundle -> a single input / DMA
    """
    scale = 1.0 / math.sqrt(HEAD_DIM)
    D, F = D_MODEL, D_FF
    zDD = jnp.zeros((D, D), jnp.float32)

    wq64 = jnp.concatenate([params["wq"] * scale, zDD], axis=1)        # (D, 2D)
    wkv = jnp.concatenate([params["wk"], params["wv"]], axis=1)        # (D, 2D)
    wo64 = jnp.concatenate([zDD, params["wo"]], axis=0)                # (2D, D)

    def row(v):
        v = jnp.asarray(v, jnp.float32).reshape(1, -1)
        return jnp.pad(v, ((0, 0), (0, F - v.shape[1])))

    vecs = jnp.concatenate([
        row(params["bq"] * scale),                                     # _R_BQ  (K-half cols)
        row(jnp.concatenate([params["bk"], params["bv"]], axis=1)),    # _R_BKV
        row(params["bo"]),                                             # _R_BO
        row(params["b1"]),                                             # _R_B1  (full width)
        row(params["g1"]), row(params["be1"]),                         # _R_G1, _R_BE1
        row(params["b2"]), row(params["g2"]), row(params["be2"]),      # _R_B2, _R_G2, _R_BE2
        jnp.zeros((16 - 9, F), jnp.float32),
    ], axis=0)                                                         # (16, F)

    return {"wq64": wq64, "wkv": wkv, "wo64": wo64,
            "w1": params["w1"], "w2": params["w2"], "vecs": vecs}


# ---------------- wrapper ----------------

@jax.jit
def cross_transformer(input1, input2, packed):
    """input1, input2: (SEQ, BATCH, D_MODEL) -- PyTorch MultiheadAttention layout.

    No transposes: (S, B, D) is reshaped (contiguous, free) to the batch-stacked
    (S*B, D) slab; the in-kernel attention mask enforces batch separation.
    Single invocation on every chip (v5e / v6e / v7x): the whole problem is
    ~60 KB, far below VMEM, so splitting over cores or pipelining would only
    add overhead.
    """
    S, B, D = input1.shape
    x1 = jnp.reshape(input1, (S * B, D))
    x2 = jnp.reshape(input2, (S * B, D))

    vmem = pltpu.MemorySpace.VMEM
    in_specs = [pl.BlockSpec(memory_space=vmem) for _ in range(8)]

    out = pl.pallas_call(
        _cross_transformer_kernel,
        out_shape=jax.ShapeDtypeStruct((S * B, D), jnp.float32),
        in_specs=in_specs,
        out_specs=pl.BlockSpec(memory_space=vmem),
    )(x1, x2, packed["wq64"], packed["wkv"], packed["wo64"],
      packed["w1"], packed["w2"], packed["vecs"])

    return jnp.reshape(out, (S, B, D))


# ---------------- pure-JAX reference (PyTorch eval-mode forward) ----------------

def _reference(input1, input2, params):
    x1 = jnp.transpose(input1, (1, 0, 2))
    x2 = jnp.transpose(input2, (1, 0, 2))
    q = x1 @ params["wq"] + params["bq"]
    k = x2 @ params["wk"] + params["bk"]
    v = x2 @ params["wv"] + params["bv"]
    B, S, D = q.shape
    qh = q.reshape(B, S, N_HEAD, HEAD_DIM).transpose(0, 2, 1, 3)
    kh = k.reshape(B, S, N_HEAD, HEAD_DIM).transpose(0, 2, 1, 3)
    vh = v.reshape(B, S, N_HEAD, HEAD_DIM).transpose(0, 2, 1, 3)
    s = jnp.einsum("bhqd,bhkd->bhqk", qh, kh) / math.sqrt(HEAD_DIM)
    p = jax.nn.softmax(s, axis=-1)
    o = jnp.einsum("bhqk,bhkd->bhqd", p, vh).transpose(0, 2, 1, 3).reshape(B, S, D)
    attn = o @ params["wo"] + params["bo"]
    y = _layernorm(x1 + attn, params["g1"], params["be1"])
    ff = jax.nn.relu(y @ params["w1"] + params["b1"]) @ params["w2"] + params["b2"]
    z = _layernorm(y + ff, params["g2"], params["be2"])
    return jnp.transpose(z, (1, 0, 2))


def init_params(key):
    """Deterministic parameter init (weights stored as (in, out), i.e. W.T of PyTorch)."""
    ks = jax.random.split(key, 8)

    def xavier(k, fan_in, fan_out):
        bound = math.sqrt(6.0 / (fan_in + fan_out))
        return jax.random.uniform(k, (fan_in, fan_out), jnp.float32, -bound, bound)

    D, F = D_MODEL, D_FF
    return {
        "wq": xavier(ks[0], D, D), "bq": jnp.zeros((1, D), jnp.float32),
        "wk": xavier(ks[1], D, D), "bk": jnp.zeros((1, D), jnp.float32),
        "wv": xavier(ks[2], D, D), "bv": jnp.zeros((1, D), jnp.float32),
        "wo": xavier(ks[3], D, D),
        "bo": 0.01 * jax.random.normal(ks[4], (1, D), jnp.float32),
        "g1": jnp.ones((1, D), jnp.float32), "be1": jnp.zeros((1, D), jnp.float32),
        "w1": xavier(ks[5], D, F),
        "b1": 0.01 * jax.random.normal(ks[6], (1, F), jnp.float32),
        "w2": xavier(ks[7], F, D), "b2": jnp.zeros((1, D), jnp.float32),
        "g2": jnp.ones((1, D), jnp.float32), "be2": jnp.zeros((1, D), jnp.float32),
    }


if __name__ == "__main__":
    key = jax.random.PRNGKey(0)
    k1, k2, kp = jax.random.split(key, 3)
    # PyTorch nn.MultiheadAttention default layout: (seq, batch, d_model)
    input1 = jax.random.normal(k1, (SEQ, BATCH, D_MODEL), jnp.float32)
    input2 = jax.random.normal(k2, (SEQ, BATCH, D_MODEL), jnp.float32)
    params = init_params(kp)
    packed = pack_params(params)

    out = jax.block_until_ready(cross_transformer(input1, input2, packed))

    ref = jax.block_until_ready(_reference(input1, input2, params))
    np.testing.assert_allclose(np.asarray(out), np.asarray(ref), rtol=1e-4, atol=1e-4)

    assert out.shape == (SEQ, BATCH, D_MODEL)
    print("KERNEL_OK")
</pallas_src>

<mosaic_0001>
module attributes {stable_mosaic.version = 11 : i64} {
  func.func @_cross_transformer_kernel(%arg0: memref<16x32xf32, #tpu.memory_space<vmem>>, %arg1: memref<16x32xf32, #tpu.memory_space<vmem>>, %arg2: memref<32x64xf32, #tpu.memory_space<vmem>>, %arg3: memref<32x64xf32, #tpu.memory_space<vmem>>, %arg4: memref<64x32xf32, #tpu.memory_space<vmem>>, %arg5: memref<32x128xf32, #tpu.memory_space<vmem>>, %arg6: memref<128x32xf32, #tpu.memory_space<vmem>>, %arg7: memref<16x128xf32, #tpu.memory_space<vmem>>, %arg8: memref<16x32xf32, #tpu.memory_space<vmem>>) attributes {dimension_semantics = [], scalar_prefetch = 0 : i64, scratch_operands = 0 : i64, tpu.core_type = #tpu.core_type<tc>} {
    %c0 = arith.constant 0 : index
    %c0_0 = arith.constant 0 : index
    %0 = vector.load %arg0[%c0, %c0_0] : memref<16x32xf32, #tpu.memory_space<vmem>>, vector<16x32xf32>
    %c0_1 = arith.constant 0 : index
    %c0_2 = arith.constant 0 : index
    %1 = vector.load %arg1[%c0_1, %c0_2] : memref<16x32xf32, #tpu.memory_space<vmem>>, vector<16x32xf32>
    %c0_3 = arith.constant 0 : index
    %c0_4 = arith.constant 0 : index
    %2 = vector.load %arg2[%c0_3, %c0_4] : memref<32x64xf32, #tpu.memory_space<vmem>>, vector<32x64xf32>
    %c0_5 = arith.constant 0 : index
    %c0_6 = arith.constant 0 : index
    %3 = vector.load %arg3[%c0_5, %c0_6] : memref<32x64xf32, #tpu.memory_space<vmem>>, vector<32x64xf32>
    %c0_7 = arith.constant 0 : index
    %c0_8 = arith.constant 0 : index
    %4 = vector.load %arg4[%c0_7, %c0_8] : memref<64x32xf32, #tpu.memory_space<vmem>>, vector<64x32xf32>
    %c0_9 = arith.constant 0 : index
    %c0_10 = arith.constant 0 : index
    %5 = vector.load %arg5[%c0_9, %c0_10] : memref<32x128xf32, #tpu.memory_space<vmem>>, vector<32x128xf32>
    %c0_11 = arith.constant 0 : index
    %c0_12 = arith.constant 0 : index
    %6 = vector.load %arg6[%c0_11, %c0_12] : memref<128x32xf32, #tpu.memory_space<vmem>>, vector<128x32xf32>
    %c0_13 = arith.constant 0 : index
    %c0_14 = arith.constant 0 : index
    %7 = vector.load %arg7[%c0_13, %c0_14] : memref<16x128xf32, #tpu.memory_space<vmem>>, vector<16x128xf32>
    %8 = vector.extract_strided_slice %7 {offsets = [0, 0], sizes = [1, 64], strides = [1, 1]} : vector<16x128xf32> to vector<1x64xf32>
    %9 = vector.extract_strided_slice %7 {offsets = [1, 0], sizes = [1, 64], strides = [1, 1]} : vector<16x128xf32> to vector<1x64xf32>
    %10 = vector.extract_strided_slice %7 {offsets = [2, 0], sizes = [1, 32], strides = [1, 1]} : vector<16x128xf32> to vector<1x32xf32>
    %11 = vector.extract_strided_slice %7 {offsets = [3, 0], sizes = [1, 128], strides = [1, 1]} : vector<16x128xf32> to vector<1x128xf32>
    %12 = vector.extract_strided_slice %7 {offsets = [4, 0], sizes = [1, 32], strides = [1, 1]} : vector<16x128xf32> to vector<1x32xf32>
    %13 = vector.extract_strided_slice %7 {offsets = [5, 0], sizes = [1, 32], strides = [1, 1]} : vector<16x128xf32> to vector<1x32xf32>
    %14 = vector.extract_strided_slice %7 {offsets = [6, 0], sizes = [1, 32], strides = [1, 1]} : vector<16x128xf32> to vector<1x32xf32>
    %15 = vector.extract_strided_slice %7 {offsets = [7, 0], sizes = [1, 32], strides = [1, 1]} : vector<16x128xf32> to vector<1x32xf32>
    %16 = vector.extract_strided_slice %7 {offsets = [8, 0], sizes = [1, 32], strides = [1, 1]} : vector<16x128xf32> to vector<1x32xf32>
    %cst = arith.constant dense<0.000000e+00> : vector<16x64xf32>
    %17 = tpu.matmul %0, %2, %cst {dimension_numbers = #tpu.dot_dimension_numbers<[1], [0], [0], [1], [0, 0, 1, 1], [], []>} : vector<16x32xf32>, vector<32x64xf32>, vector<16x64xf32> -> vector<16x64xf32>
    %18 = vector.broadcast %8 : vector<1x64xf32> to vector<16x64xf32>
    %19 = arith.addf %17, %18 : vector<16x64xf32>
    %cst_15 = arith.constant dense<0.000000e+00> : vector<16x64xf32>
    %20 = tpu.matmul %1, %3, %cst_15 {dimension_numbers = #tpu.dot_dimension_numbers<[1], [0], [0], [1], [0, 0, 1, 1], [], []>} : vector<16x32xf32>, vector<32x64xf32>, vector<16x64xf32> -> vector<16x64xf32>
    %21 = vector.broadcast %9 : vector<1x64xf32> to vector<16x64xf32>
    %22 = arith.addf %20, %21 : vector<16x64xf32>
    %23 = tpu.iota {dimensions = array<i32: 1>} : vector<1x64xi32>
    %24 = tpu.iota {dimensions = array<i32: 0>} : vector<16x16xi32>
    %25 = tpu.iota {dimensions = array<i32: 1>} : vector<16x16xi32>
    %26 = arith.xori %24, %25 : vector<16x16xi32>
    %c1_i32 = arith.constant 1 : i32
    %27 = vector.broadcast %c1_i32 : i32 to vector<16x16xi32>
    %28 = arith.andi %26, %27 : vector<16x16xi32>
    %c0_i32 = arith.constant 0 : i32
    %29 = vector.broadcast %c0_i32 : i32 to vector<16x16xi32>
    %30 = arith.cmpi eq, %28, %29 : vector<16x16xi32>
    %cst_16 = arith.constant 0.000000e+00 : f32
    %cst_17 = arith.constant -1.000000e+30 : f32
    %31 = vector.broadcast %cst_16 : f32 to vector<16x16xf32>
    %32 = vector.broadcast %cst_17 : f32 to vector<16x16xf32>
    %33 = arith.select %30, %31, %32 : vector<16x16xi1>, vector<16x16xf32>
    %c0_i32_18 = arith.constant 0 : i32
    %34 = vector.broadcast %c0_i32_18 : i32 to vector<1x64xi32>
    %35 = arith.cmpi sge, %23, %34 : vector<1x64xi32>
    %c8_i32 = arith.constant 8 : i32
    %36 = vector.broadcast %c8_i32 : i32 to vector<1x64xi32>
    %37 = arith.cmpi slt, %23, %36 : vector<1x64xi32>
    %38 = arith.andi %35, %37 : vector<1x64xi1>
    %c32_i32 = arith.constant 32 : i32
    %39 = vector.broadcast %c32_i32 : i32 to vector<1x64xi32>
    %40 = arith.cmpi sge, %23, %39 : vector<1x64xi32>
    %c40_i32 = arith.constant 40 : i32
    %41 = vector.broadcast %c40_i32 : i32 to vector<1x64xi32>
    %42 = arith.cmpi slt, %23, %41 : vector<1x64xi32>
    %43 = arith.andi %40, %42 : vector<1x64xi1>
    %cst_19 = arith.constant 0.000000e+00 : f32
    %44 = vector.shape_cast %38 : vector<1x64xi1> to vector<1x64xi1>
    %45 = vector.broadcast %44 : vector<1x64xi1> to vector<16x64xi1>
    %46 = vector.broadcast %cst_19 : f32 to vector<16x64xf32>
    %47 = arith.select %45, %19, %46 : vector<16x64xi1>, vector<16x64xf32>
    %cst_20 = arith.constant dense<0.000000e+00> : vector<16x16xf32>
    %48 = tpu.matmul %47, %22, %cst_20 {dimension_numbers = #tpu.dot_dimension_numbers<[1], [1], [0], [0], [0, 0, 1, 0], [], []>} : vector<16x64xf32>, vector<16x64xf32>, vector<16x16xf32> -> vector<16x16xf32>
    %49 = arith.addf %48, %33 : vector<16x16xf32>
    %cst_21 = arith.constant dense<0xFF800000> : vector<16xf32>
    %50 = vector.multi_reduction <maximumf>, %49, %cst_21 [1] : vector<16x16xf32> to vector<16xf32>
    %51 = vector.shape_cast %50 : vector<16xf32> to vector<16x1xf32>
    %52 = vector.broadcast %51 : vector<16x1xf32> to vector<16x16xf32>
    %53 = arith.subf %49, %52 : vector<16x16xf32>
    %54 = math.exp %53 : vector<16x16xf32>
    %cst_22 = arith.constant dense<0.000000e+00> : vector<16xf32>
    %55 = vector.multi_reduction <add>, %54, %cst_22 [1] : vector<16x16xf32> to vector<16xf32>
    %56 = vector.shape_cast %55 : vector<16xf32> to vector<16x1xf32>
    %57 = tpu.reciprocal %56 : vector<16x1xf32> -> vector<16x1xf32>
    %58 = vector.broadcast %57 : vector<16x1xf32> to vector<16x16xf32>
    %59 = arith.mulf %54, %58 : vector<16x16xf32>
    %cst_23 = arith.constant 0.000000e+00 : f32
    %60 = vector.shape_cast %43 : vector<1x64xi1> to vector<1x64xi1>
    %61 = vector.broadcast %60 : vector<1x64xi1> to vector<16x64xi1>
    %62 = vector.broadcast %cst_23 : f32 to vector<16x64xf32>
    %63 = arith.select %61, %22, %62 : vector<16x64xi1>, vector<16x64xf32>
    %cst_24 = arith.constant dense<0.000000e+00> : vector<16x64xf32>
    %64 = tpu.matmul %59, %63, %cst_24 {dimension_numbers = #tpu.dot_dimension_numbers<[1], [0], [0], [1], [0, 0, 1, 1], [], []>} : vector<16x16xf32>, vector<16x64xf32>, vector<16x64xf32> -> vector<16x64xf32>
    %c8_i32_25 = arith.constant 8 : i32
    %65 = vector.broadcast %c8_i32_25 : i32 to vector<1x64xi32>
    %66 = arith.cmpi sge, %23, %65 : vector<1x64xi32>
    %c16_i32 = arith.constant 16 : i32
    %67 = vector.broadcast %c16_i32 : i32 to vector<1x64xi32>
    %68 = arith.cmpi slt, %23, %67 : vector<1x64xi32>
    %69 = arith.andi %66, %68 : vector<1x64xi1>
    %c40_i32_26 = arith.constant 40 : i32
    %70 = vector.broadcast %c40_i32_26 : i32 to vector<1x64xi32>
    %71 = arith.cmpi sge, %23, %70 : vector<1x64xi32>
    %c48_i32 = arith.constant 48 : i32
    %72 = vector.broadcast %c48_i32 : i32 to vector<1x64xi32>
    %73 = arith.cmpi slt, %23, %72 : vector<1x64xi32>
    %74 = arith.andi %71, %73 : vector<1x64xi1>
    %cst_27 = arith.constant 0.000000e+00 : f32
    %75 = vector.shape_cast %69 : vector<1x64xi1> to vector<1x64xi1>
    %76 = vector.broadcast %75 : vector<1x64xi1> to vector<16x64xi1>
    %77 = vector.broadcast %cst_27 : f32 to vector<16x64xf32>
    %78 = arith.select %76, %19, %77 : vector<16x64xi1>, vector<16x64xf32>
    %cst_28 = arith.constant dense<0.000000e+00> : vector<16x16xf32>
    %79 = tpu.matmul %78, %22, %cst_28 {dimension_numbers = #tpu.dot_dimension_numbers<[1], [1], [0], [0], [0, 0, 1, 0], [], []>} : vector<16x64xf32>, vector<16x64xf32>, vector<16x16xf32> -> vector<16x16xf32>
    %80 = arith.addf %79, %33 : vector<16x16xf32>
    %cst_29 = arith.constant dense<0xFF800000> : vector<16xf32>
    %81 = vector.multi_reduction <maximumf>, %80, %cst_29 [1] : vector<16x16xf32> to vector<16xf32>
    %82 = vector.shape_cast %81 : vector<16xf32> to vector<16x1xf32>
    %83 = vector.broadcast %82 : vector<16x1xf32> to vector<16x16xf32>
    %84 = arith.subf %80, %83 : vector<16x16xf32>
    %85 = math.exp %84 : vector<16x16xf32>
    %cst_30 = arith.constant dense<0.000000e+00> : vector<16xf32>
    %86 = vector.multi_reduction <add>, %85, %cst_30 [1] : vector<16x16xf32> to vector<16xf32>
    %87 = vector.shape_cast %86 : vector<16xf32> to vector<16x1xf32>
    %88 = tpu.reciprocal %87 : vector<16x1xf32> -> vector<16x1xf32>
    %89 = vector.broadcast %88 : vector<16x1xf32> to vector<16x16xf32>
    %90 = arith.mulf %85, %89 : vector<16x16xf32>
    %cst_31 = arith.constant 0.000000e+00 : f32
    %91 = vector.shape_cast %74 : vector<1x64xi1> to vector<1x64xi1>
    %92 = vector.broadcast %91 : vector<1x64xi1> to vector<16x64xi1>
    %93 = vector.broadcast %cst_31 : f32 to vector<16x64xf32>
    %94 = arith.select %92, %22, %93 : vector<16x64xi1>, vector<16x64xf32>
    %cst_32 = arith.constant dense<0.000000e+00> : vector<16x64xf32>
    %95 = tpu.matmul %90, %94, %cst_32 {dimension_numbers = #tpu.dot_dimension_numbers<[1], [0], [0], [1], [0, 0, 1, 1], [], []>} : vector<16x16xf32>, vector<16x64xf32>, vector<16x64xf32> -> vector<16x64xf32>
    %96 = arith.addf %64, %95 : vector<16x64xf32>
    %c16_i32_33 = arith.constant 16 : i32
    %97 = vector.broadcast %c16_i32_33 : i32 to vector<1x64xi32>
    %98 = arith.cmpi sge, %23, %97 : vector<1x64xi32>
    %c24_i32 = arith.constant 24 : i32
    %99 = vector.broadcast %c24_i32 : i32 to vector<1x64xi32>
    %100 = arith.cmpi slt, %23, %99 : vector<1x64xi32>
    %101 = arith.andi %98, %100 : vector<1x64xi1>
    %c48_i32_34 = arith.constant 48 : i32
    %102 = vector.broadcast %c48_i32_34 : i32 to vector<1x64xi32>
    %103 = arith.cmpi sge, %23, %102 : vector<1x64xi32>
    %c56_i32 = arith.constant 56 : i32
    %104 = vector.broadcast %c56_i32 : i32 to vector<1x64xi32>
    %105 = arith.cmpi slt, %23, %104 : vector<1x64xi32>
    %106 = arith.andi %103, %105 : vector<1x64xi1>
    %cst_35 = arith.constant 0.000000e+00 : f32
    %107 = vector.shape_cast %101 : vector<1x64xi1> to vector<1x64xi1>
    %108 = vector.broadcast %107 : vector<1x64xi1> to vector<16x64xi1>
    %109 = vector.broadcast %cst_35 : f32 to vector<16x64xf32>
    %110 = arith.select %108, %19, %109 : vector<16x64xi1>, vector<16x64xf32>
    %cst_36 = arith.constant dense<0.000000e+00> : vector<16x16xf32>
    %111 = tpu.matmul %110, %22, %cst_36 {dimension_numbers = #tpu.dot_dimension_numbers<[1], [1], [0], [0], [0, 0, 1, 0], [], []>} : vector<16x64xf32>, vector<16x64xf32>, vector<16x16xf32> -> vector<16x16xf32>
    %112 = arith.addf %111, %33 : vector<16x16xf32>
    %cst_37 = arith.constant dense<0xFF800000> : vector<16xf32>
    %113 = vector.multi_reduction <maximumf>, %112, %cst_37 [1] : vector<16x16xf32> to vector<16xf32>
    %114 = vector.shape_cast %113 : vector<16xf32> to vector<16x1xf32>
    %115 = vector.broadcast %114 : vector<16x1xf32> to vector<16x16xf32>
    %116 = arith.subf %112, %115 : vector<16x16xf32>
    %117 = math.exp %116 : vector<16x16xf32>
    %cst_38 = arith.constant dense<0.000000e+00> : vector<16xf32>
    %118 = vector.multi_reduction <add>, %117, %cst_38 [1] : vector<16x16xf32> to vector<16xf32>
    %119 = vector.shape_cast %118 : vector<16xf32> to vector<16x1xf32>
    %120 = tpu.reciprocal %119 : vector<16x1xf32> -> vector<16x1xf32>
    %121 = vector.broadcast %120 : vector<16x1xf32> to vector<16x16xf32>
    %122 = arith.mulf %117, %121 : vector<16x16xf32>
    %cst_39 = arith.constant 0.000000e+00 : f32
    %123 = vector.shape_cast %106 : vector<1x64xi1> to vector<1x64xi1>
    %124 = vector.broadcast %123 : vector<1x64xi1> to vector<16x64xi1>
    %125 = vector.broadcast %cst_39 : f32 to vector<16x64xf32>
    %126 = arith.select %124, %22, %125 : vector<16x64xi1>, vector<16x64xf32>
    %cst_40 = arith.constant dense<0.000000e+00> : vector<16x64xf32>
    %127 = tpu.matmul %122, %126, %cst_40 {dimension_numbers = #tpu.dot_dimension_numbers<[1], [0], [0], [1], [0, 0, 1, 1], [], []>} : vector<16x16xf32>, vector<16x64xf32>, vector<16x64xf32> -> vector<16x64xf32>
    %128 = arith.addf %96, %127 : vector<16x64xf32>
    %c24_i32_41 = arith.constant 24 : i32
    %129 = vector.broadcast %c24_i32_41 : i32 to vector<1x64xi32>
    %130 = arith.cmpi sge, %23, %129 : vector<1x64xi32>
    %c32_i32_42 = arith.constant 32 : i32
    %131 = vector.broadcast %c32_i32_42 : i32 to vector<1x64xi32>
    %132 = arith.cmpi slt, %23, %131 : vector<1x64xi32>
    %133 = arith.andi %130, %132 : vector<1x64xi1>
    %c56_i32_43 = arith.constant 56 : i32
    %134 = vector.broadcast %c56_i32_43 : i32 to vector<1x64xi32>
    %135 = arith.cmpi sge, %23, %134 : vector<1x64xi32>
    %c64_i32 = arith.constant 64 : i32
    %136 = vector.broadcast %c64_i32 : i32 to vector<1x64xi32>
    %137 = arith.cmpi slt, %23, %136 : vector<1x64xi32>
    %138 = arith.andi %135, %137 : vector<1x64xi1>
    %cst_44 = arith.constant 0.000000e+00 : f32
    %139 = vector.shape_cast %133 : vector<1x64xi1> to vector<1x64xi1>
    %140 = vector.broadcast %139 : vector<1x64xi1> to vector<16x64xi1>
    %141 = vector.broadcast %cst_44 : f32 to vector<16x64xf32>
    %142 = arith.select %140, %19, %141 : vector<16x64xi1>, vector<16x64xf32>
    %cst_45 = arith.constant dense<0.000000e+00> : vector<16x16xf32>
    %143 = tpu.matmul %142, %22, %cst_45 {dimension_numbers = #tpu.dot_dimension_numbers<[1], [1], [0], [0], [0, 0, 1, 0], [], []>} : vector<16x64xf32>, vector<16x64xf32>, vector<16x16xf32> -> vector<16x16xf32>
    %144 = arith.addf %143, %33 : vector<16x16xf32>
    %cst_46 = arith.constant dense<0xFF800000> : vector<16xf32>
    %145 = vector.multi_reduction <maximumf>, %144, %cst_46 [1] : vector<16x16xf32> to vector<16xf32>
    %146 = vector.shape_cast %145 : vector<16xf32> to vector<16x1xf32>
    %147 = vector.broadcast %146 : vector<16x1xf32> to vector<16x16xf32>
    %148 = arith.subf %144, %147 : vector<16x16xf32>
    %149 = math.exp %148 : vector<16x16xf32>
    %cst_47 = arith.constant dense<0.000000e+00> : vector<16xf32>
    %150 = vector.multi_reduction <add>, %149, %cst_47 [1] : vector<16x16xf32> to vector<16xf32>
    %151 = vector.shape_cast %150 : vector<16xf32> to vector<16x1xf32>
    %152 = tpu.reciprocal %151 : vector<16x1xf32> -> vector<16x1xf32>
    %153 = vector.broadcast %152 : vector<16x1xf32> to vector<16x16xf32>
    %154 = arith.mulf %149, %153 : vector<16x16xf32>
    %cst_48 = arith.constant 0.000000e+00 : f32
    %155 = vector.shape_cast %138 : vector<1x64xi1> to vector<1x64xi1>
    %156 = vector.broadcast %155 : vector<1x64xi1> to vector<16x64xi1>
    %157 = vector.broadcast %cst_48 : f32 to vector<16x64xf32>
    %158 = arith.select %156, %22, %157 : vector<16x64xi1>, vector<16x64xf32>
    %cst_49 = arith.constant dense<0.000000e+00> : vector<16x64xf32>
    %159 = tpu.matmul %154, %158, %cst_49 {dimension_numbers = #tpu.dot_dimension_numbers<[1], [0], [0], [1], [0, 0, 1, 1], [], []>} : vector<16x16xf32>, vector<16x64xf32>, vector<16x64xf32> -> vector<16x64xf32>
    %160 = arith.addf %128, %159 : vector<16x64xf32>
    %cst_50 = arith.constant dense<0.000000e+00> : vector<16x32xf32>
    %161 = tpu.matmul %160, %4, %cst_50 {dimension_numbers = #tpu.dot_dimension_numbers<[1], [0], [0], [1], [0, 0, 1, 1], [], []>} : vector<16x64xf32>, vector<64x32xf32>, vector<16x32xf32> -> vector<16x32xf32>
    %162 = vector.broadcast %10 : vector<1x32xf32> to vector<16x32xf32>
    %163 = arith.addf %161, %162 : vector<16x32xf32>
    %164 = arith.addf %0, %163 : vector<16x32xf32>
    %cst_51 = arith.constant dense<0.000000e+00> : vector<16xf32>
    %165 = vector.multi_reduction <add>, %164, %cst_51 [1] : vector<16x32xf32> to vector<16xf32>
    %166 = vector.shape_cast %165 : vector<16xf32> to vector<16x1xf32>
    %cst_52 = arith.constant 3.200000e+01 : f32
    %167 = vector.broadcast %cst_52 : f32 to vector<16x1xf32>
    %168 = arith.divf %166, %167 : vector<16x1xf32>
    %169 = vector.broadcast %168 : vector<16x1xf32> to vector<16x32xf32>
    %170 = arith.subf %164, %169 : vector<16x32xf32>
    %171 = arith.mulf %170, %170 : vector<16x32xf32>
    %cst_53 = arith.constant dense<0.000000e+00> : vector<16xf32>
    %172 = vector.multi_reduction <add>, %171, %cst_53 [1] : vector<16x32xf32> to vector<16xf32>
    %173 = vector.shape_cast %172 : vector<16xf32> to vector<16x1xf32>
    %cst_54 = arith.constant 3.200000e+01 : f32
    %174 = vector.broadcast %cst_54 : f32 to vector<16x1xf32>
    %175 = arith.divf %173, %174 : vector<16x1xf32>
    %cst_55 = arith.constant 9.99999974E-6 : f32
    %176 = vector.broadcast %cst_55 : f32 to vector<16x1xf32>
    %177 = arith.addf %175, %176 : vector<16x1xf32>
    %178 = math.rsqrt %177 : vector<16x1xf32>
    %179 = vector.broadcast %178 : vector<16x1xf32> to vector<16x32xf32>
    %180 = arith.mulf %170, %179 : vector<16x32xf32>
    %181 = vector.broadcast %12 : vector<1x32xf32> to vector<16x32xf32>
    %182 = arith.mulf %180, %181 : vector<16x32xf32>
    %183 = vector.broadcast %13 : vector<1x32xf32> to vector<16x32xf32>
    %184 = arith.addf %182, %183 : vector<16x32xf32>
    %cst_56 = arith.constant dense<0.000000e+00> : vector<16x128xf32>
    %185 = tpu.matmul %184, %5, %cst_56 {dimension_numbers = #tpu.dot_dimension_numbers<[1], [0], [0], [1], [0, 0, 1, 1], [], []>} : vector<16x32xf32>, vector<32x128xf32>, vector<16x128xf32> -> vector<16x128xf32>
    %186 = vector.broadcast %11 : vector<1x128xf32> to vector<16x128xf32>
    %187 = arith.addf %185, %186 : vector<16x128xf32>
    %cst_57 = arith.constant 0.000000e+00 : f32
    %188 = vector.broadcast %cst_57 : f32 to vector<16x128xf32>
    %189 = arith.maximumf %187, %188 : vector<16x128xf32>
    %cst_58 = arith.constant dense<0.000000e+00> : vector<16x32xf32>
    %190 = tpu.matmul %189, %6, %cst_58 {dimension_numbers = #tpu.dot_dimension_numbers<[1], [0], [0], [1], [0, 0, 1, 1], [], []>} : vector<16x128xf32>, vector<128x32xf32>, vector<16x32xf32> -> vector<16x32xf32>
    %191 = vector.broadcast %14 : vector<1x32xf32> to vector<16x32xf32>
    %192 = arith.addf %190, %191 : vector<16x32xf32>
    %193 = arith.addf %184, %192 : vector<16x32xf32>
    %cst_59 = arith.constant dense<0.000000e+00> : vector<16xf32>
    %194 = vector.multi_reduction <add>, %193, %cst_59 [1] : vector<16x32xf32> to vector<16xf32>
    %195 = vector.shape_cast %194 : vector<16xf32> to vector<16x1xf32>
    %cst_60 = arith.constant 3.200000e+01 : f32
    %196 = vector.broadcast %cst_60 : f32 to vector<16x1xf32>
    %197 = arith.divf %195, %196 : vector<16x1xf32>
    %198 = vector.broadcast %197 : vector<16x1xf32> to vector<16x32xf32>
    %199 = arith.subf %193, %198 : vector<16x32xf32>
    %200 = arith.mulf %199, %199 : vector<16x32xf32>
    %cst_61 = arith.constant dense<0.000000e+00> : vector<16xf32>
    %201 = vector.multi_reduction <add>, %200, %cst_61 [1] : vector<16x32xf32> to vector<16xf32>
    %202 = vector.shape_cast %201 : vector<16xf32> to vector<16x1xf32>
    %cst_62 = arith.constant 3.200000e+01 : f32
    %203 = vector.broadcast %cst_62 : f32 to vector<16x1xf32>
    %204 = arith.divf %202, %203 : vector<16x1xf32>
    %cst_63 = arith.constant 9.99999974E-6 : f32
    %205 = vector.broadcast %cst_63 : f32 to vector<16x1xf32>
    %206 = arith.addf %204, %205 : vector<16x1xf32>
    %207 = math.rsqrt %206 : vector<16x1xf32>
    %208 = vector.broadcast %207 : vector<16x1xf32> to vector<16x32xf32>
    %209 = arith.mulf %199, %208 : vector<16x32xf32>
    %210 = vector.broadcast %15 : vector<1x32xf32> to vector<16x32xf32>
    %211 = arith.mulf %209, %210 : vector<16x32xf32>
    %212 = vector.broadcast %16 : vector<1x32xf32> to vector<16x32xf32>
    %213 = arith.addf %211, %212 : vector<16x32xf32>
    %c0_64 = arith.constant 0 : index
    %c0_65 = arith.constant 0 : index
    %214 = vector.load %arg8[%c0_64, %c0_65] : memref<16x32xf32, #tpu.memory_space<vmem>>, vector<16x32xf32>
    tpu.vector_store %arg8[%c0_64, %c0_65], %213 {strides = array<i32>} : memref<16x32xf32, #tpu.memory_space<vmem>>, vector<16x32xf32>,
    return
  }
}

</mosaic_0001>

<llo_original>
// kernel: cross_transformer.1
$region0: #{cross_transformer.1}
  #allocation0 [shape = 'u32[]', space=smem, size = 0x4, offset = 0x4, fixed_abs, tag = 'smem constant byte address 0x4 - core index']
  #allocation1 [shape = 'u32[144,128]{1,0:T(1,128)}', space=vmem, size = 0x12000, scoped, tag = 'internal scratch']
  %s0 = inlined_call_operand.vmem [shape: f32[16,32], index: 0, kind: input, shape index: {}]
  %s1 = inlined_call_operand.vmem [shape: f32[16,32], index: 1, kind: input, shape index: {}]
  %s2 = inlined_call_operand.vmem [shape: f32[32,64], index: 2, kind: input, shape index: {}]
  %s3 = inlined_call_operand.vmem [shape: f32[32,64], index: 3, kind: input, shape index: {}]
  %s4 = inlined_call_operand.vmem [shape: f32[64,32], index: 4, kind: input, shape index: {}]
  %s5 = inlined_call_operand.vmem [shape: f32[32,128], index: 5, kind: input, shape index: {}]
  %s6 = inlined_call_operand.vmem [shape: f32[128,32], index: 6, kind: input, shape index: {}]
  %s7 = inlined_call_operand.vmem [shape: f32[16,128], index: 7, kind: input, shape index: {}]
  %s8 = inlined_call_operand.hbm [shape: f32[16,32], index: 8, kind: output, shape index: {}]
  %s9 = sld [smem:[#allocation0]]
  $region42: #{cross_transformer.1} parent=0
    _
  %s11 = ssub.s32 1, %s9
  %s12 = scalar_select 0, %s11, %s9
  $region1: #{cross_transformer.1} parent=0
    #allocation2 [shape = 'u8[8192]{0}', space=vmem, size = 0x2000, scoped, tag = 'output window, operand 0, single buffered']
    #allocation3 [shape = 's32[1]{0}', space=sflag, size = 0x4, scoped, tag = 'scoped memory for cross_transformer.1']
    %13 = vsyncpa [#allocation3], 0
    // Predicated region
    $region2: #{cross_transformer.1} parent=1 // pred_check
      _
    $region3: #{cross_transformer.1} parent=1 // pred_check_branch
      %15 = sbr.rel (0) target = $region5
    $region4: #{cross_transformer.1} parent=1 // pred_region
      _
    $region5: #{cross_transformer.1} parent=1 // pred_fallthru
      _
    // Predicated region
    $region6: #{cross_transformer.1} parent=1 // pred_check
      _
    $region7: #{cross_transformer.1} parent=1 // pred_check_branch
      %17 = sbr.rel (0) target = $region9
    $region8: #{cross_transformer.1} parent=1 // pred_region
      _
    $region9: #{cross_transformer.1} parent=1 // pred_fallthru
      _
    // Predicated region
    $region10: #{cross_transformer.1} parent=1 // pred_check
      _
    $region11: #{cross_transformer.1} parent=1 // pred_check_branch
      %19 = sbr.rel (0) target = $region13
    $region12: #{cross_transformer.1} parent=1 // pred_region
      _
    $region13: #{cross_transformer.1} parent=1 // pred_fallthru
      _
    // Predicated region
    $region14: #{cross_transformer.1} parent=1 // pred_check
      _
    $region15: #{cross_transformer.1} parent=1 // pred_check_branch
      %21 = sbr.rel (0) target = $region17
    $region16: #{cross_transformer.1} parent=1 // pred_region
      _
    $region17: #{cross_transformer.1} parent=1 // pred_fallthru
      _
    // Predicated region
    $region18: #{cross_transformer.1} parent=1 // pred_check
      _
    $region19: #{cross_transformer.1} parent=1 // pred_check_branch
      %23 = sbr.rel (0) target = $region21
    $region20: #{cross_transformer.1} parent=1 // pred_region
      _
    $region21: #{cross_transformer.1} parent=1 // pred_fallthru
      _
    // Predicated region
    $region22: #{cross_transformer.1} parent=1 // pred_check
      _
    $region23: #{cross_transformer.1} parent=1 // pred_check_branch
      %25 = sbr.rel (0) target = $region25
    $region24: #{cross_transformer.1} parent=1 // pred_region
      _
    $region25: #{cross_transformer.1} parent=1 // pred_fallthru
      _
    // Predicated region
    $region26: #{cross_transformer.1} parent=1 // pred_check
      _
    $region27: #{cross_transformer.1} parent=1 // pred_check_branch
      %27 = sbr.rel (0) target = $region29
    $region28: #{cross_transformer.1} parent=1 // pred_region
      _
    $region29: #{cross_transformer.1} parent=1 // pred_fallthru
      _
    // Predicated region
    $region30: #{cross_transformer.1} parent=1 // pred_check
      _
    $region31: #{cross_transformer.1} parent=1 // pred_check_branch
      %29 = sbr.rel (0) target = $region33
    $region32: #{cross_transformer.1} parent=1 // pred_region
      _
    $region33: #{cross_transformer.1} parent=1 // pred_fallthru
      _
    %v30 = vld [vmem:[%s0] sm:$0xff]
    %v31 = vld [vmem:[%s0 + $0x8] sm:$0xff]
    %v32 = vld [vmem:[%s1] sm:$0xff]
    %v33 = vld [vmem:[%s1 + $0x8] sm:$0xff]
    %v34 = vld [vmem:[%s2] sm:$0xff]
    %v35 = vld [vmem:[%s2 + $0x8] sm:$0xff]
    %v36 = vld [vmem:[%s2 + $0x10] sm:$0xff]
    %v37 = vld [vmem:[%s2 + $0x18] sm:$0xff]
    %v38 = vld [vmem:[%s3] sm:$0xff]
    %v39 = vld [vmem:[%s3 + $0x8] sm:$0xff]
    %v40 = vld [vmem:[%s3 + $0x10] sm:$0xff]
    %v41 = vld [vmem:[%s3 + $0x18] sm:$0xff]
    %v42 = vld [vmem:[%s4] sm:$0xff]
    %v43 = vld [vmem:[%s4 + $0x8] sm:$0xff]
    %v44 = vld [vmem:[%s4 + $0x10] sm:$0xff]
    %v45 = vld [vmem:[%s4 + $0x18] sm:$0xff]
    %v46 = vld [vmem:[%s4 + $0x20] sm:$0xff]
    %v47 = vld [vmem:[%s4 + $0x28] sm:$0xff]
    %v48 = vld [vmem:[%s4 + $0x30] sm:$0xff]
    %v49 = vld [vmem:[%s4 + $0x38] sm:$0xff]
    %v50 = vld [vmem:[%s5] sm:$0xff]
    %v51 = vld [vmem:[%s5 + $0x8] sm:$0xff]
    %v52 = vld [vmem:[%s5 + $0x10] sm:$0xff]
    %v53 = vld [vmem:[%s5 + $0x18] sm:$0xff]
    %v54 = vld [vmem:[%s6] sm:$0xff]
    %v55 = vld [vmem:[%s6 + $0x8] sm:$0xff]
    %v56 = vld [vmem:[%s6 + $0x10] sm:$0xff]
    %v57 = vld [vmem:[%s6 + $0x18] sm:$0xff]
    %v58 = vld [vmem:[%s6 + $0x20] sm:$0xff]
    %v59 = vld [vmem:[%s6 + $0x28] sm:$0xff]
    %v60 = vld [vmem:[%s6 + $0x30] sm:$0xff]
    %v61 = vld [vmem:[%s6 + $0x38] sm:$0xff]
    %v62 = vld [vmem:[%s6 + $0x40] sm:$0xff]
    %v63 = vld [vmem:[%s6 + $0x48] sm:$0xff]
    %v64 = vld [vmem:[%s6 + $0x50] sm:$0xff]
    %v65 = vld [vmem:[%s6 + $0x58] sm:$0xff]
    %v66 = vld [vmem:[%s6 + $0x60] sm:$0xff]
    %v67 = vld [vmem:[%s6 + $0x68] sm:$0xff]
    %v68 = vld [vmem:[%s6 + $0x70] sm:$0xff]
    %v69 = vld [vmem:[%s6 + $0x78] sm:$0xff]
    %v70 = vld [vmem:[%s7] sm:$0xff]
    %v71 = vld [vmem:[%s7 + $0x8] sm:$0xff]
    %v72 = vlaneseq
    %v73 = vshrl.u32 %v72, 7
    %v74 = vsub.s32 0, %v73
    %v75 = vrot.slane %v70, %v74
    %vm76 = vcmask 261120
    %v78 = vsel %vm76, %v30, 0
    %v81 = vsel %vm76, %v31, 0
    %83 = vmatprep.subr.mxu0 0.0
    %84 = vmatpush1.msra.mxu0 0.0
    %85 = vmatprep.subr.mxu0 0.0
    %86 = vmatpush1.msra.mxu0 0.0
    %87 = vmatprep.subr.mxu0 0.0
    %88 = vmatpush1.msra.mxu0 0.0
    %89 = vmatprep.subr.mxu0 0.0
    %90 = vmatpush1.msra.mxu0 0.0
    %91 = vmatprep.subr.mxu0 0.0
    %92 = vmatpush1.msra.mxu0 0.0
    %93 = vmatprep.subr.mxu0 0.0
    %94 = vmatpush1.msra.mxu0 0.0
    %95 = vmatprep.subr.mxu0 0.0
    %96 = vmatpush1.msra.mxu0 0.0
    %97 = vmatprep.subr.mxu0 0.0
    %98 = vmatpush1.msra.mxu0 0.0
    %99 = vmatprep.subr.mxu0 0.0
    %100 = vmatpush1.msra.mxu0 0.0
    %101 = vmatprep.subr.mxu0 0.0
    %102 = vmatpush1.msra.mxu0 0.0
    %103 = vmatprep.subr.mxu0 0.0
    %104 = vmatpush1.msra.mxu0 0.0
    %105 = vmatprep.subr.mxu0 0.0
    %106 = vmatpush1.msra.mxu0 0.0
    %107 = vmatprep.subr.mxu0 0.0
    %108 = vmatpush1.msra.mxu0 %v37
    %109 = vmatprep.subr.mxu0 0.0
    %110 = vmatpush1.msra.mxu0 %v36
    %111 = vmatprep.subr.mxu0 0.0
    %112 = vmatpush1.msra.mxu0 %v35
    %113 = vmatprep.subr.mxu0 0.0
    %114 = vmatpush1.msra.mxu0 %v34
    %115 = vmatprep.subr.mxu0 0.0
    %116 = vmatpush2.msra.mxu0 0.0
    %117 = vmatprep.subr.mxu0 0.0
    %118 = vmatpush2.msra.mxu0 0.0
    %119 = vmatprep.subr.mxu0 0.0
    %120 = vmatpush2.msra.mxu0 0.0
    %121 = vmatprep.subr.mxu0 0.0
    %122 = vmatpush2.msra.mxu0 0.0
    %123 = vmatprep.subr.mxu0 0.0
    %124 = vmatpush2.msra.mxu0 0.0
    %125 = vmatprep.subr.mxu0 0.0
    %126 = vmatpush2.msra.mxu0 0.0
    %127 = vmatprep.subr.mxu0 0.0
    %128 = vmatpush2.msra.mxu0 0.0
    %129 = vmatprep.subr.mxu0 0.0
    %130 = vmatpush2.msra.mxu0 0.0
    %131 = vmatprep.subr.mxu0 0.0
    %132 = vmatpush2.msra.mxu0 0.0
    %133 = vmatprep.subr.mxu0 0.0
    %134 = vmatpush2.msra.mxu0 0.0
    %135 = vmatprep.subr.mxu0 0.0
    %136 = vmatpush2.msra.mxu0 0.0
    %137 = vmatprep.subr.mxu0 0.0
    %138 = vmatpush2.msra.mxu0 0.0
    %139 = vmatprep.subr.mxu0 0.0
    %140 = vmatpush2.msra.mxu0 0.0
    %141 = vmatprep.subr.mxu0 0.0
    %142 = vmatpush2.msra.mxu0 0.0
    %143 = vmatprep.subr.mxu0 0.0
    %144 = vmatpush2.msra.mxu0 0.0
    %145 = vmatprep.subr.mxu0 0.0
    %146 = vmatpush2.msra.mxu0 0.0
    %147 = vmatprep.mubr.f32.mxu0 0.0
    %148 = vmatmul.mubr.f32.gmra.mxu0 %v78
    %v149 = vpop.f32.mrf.mxu0
    %v150 = vadd.f32 %v75, %v149
    %v151 = vpop.f32.mrf.mxu0
    %152 = vmatprep.mubr.f32.mxu0 0.0
    %153 = vmatmul.mubr.f32.gmra.mxu0 %v81
    %v154 = vpop.f32.mrf.mxu0
    %v155 = vadd.f32 %v75, %v154
    %v156 = vpop.f32.mrf.mxu0
    %157 = vdwg.mxu0
    %v158 = vlaneseq
    %v159 = vshrl.u32 %v158, 7
    %v160 = vsub.s32 1, %v159
    %v161 = vrot.slane %v70, %v160
    %v163 = vsel %vm76, %v32, 0
    %v166 = vsel %vm76, %v33, 0
    %168 = vmatprep.subr.mxu0 0.0
    %169 = vmatpush1.msra.mxu0 0.0
    %170 = vmatprep.subr.mxu0 0.0
    %171 = vmatpush1.msra.mxu0 0.0
    %172 = vmatprep.subr.mxu0 0.0
    %173 = vmatpush1.msra.mxu0 0.0
    %174 = vmatprep.subr.mxu0 0.0
    %175 = vmatpush1.msra.mxu0 0.0
    %176 = vmatprep.subr.mxu0 0.0
    %177 = vmatpush1.msra.mxu0 0.0
    %178 = vmatprep.subr.mxu0 0.0
    %179 = vmatpush1.msra.mxu0 0.0
    %180 = vmatprep.subr.mxu0 0.0
    %181 = vmatpush1.msra.mxu0 0.0
    %182 = vmatprep.subr.mxu0 0.0
    %183 = vmatpush1.msra.mxu0 0.0
    %184 = vmatprep.subr.mxu0 0.0
    %185 = vmatpush1.msra.mxu0 0.0
    %186 = vmatprep.subr.mxu0 0.0
    %187 = vmatpush1.msra.mxu0 0.0
    %188 = vmatprep.subr.mxu0 0.0
    %189 = vmatpush1.msra.mxu0 0.0
    %190 = vmatprep.subr.mxu0 0.0
    %191 = vmatpush1.msra.mxu0 0.0
    %192 = vmatprep.subr.mxu0 0.0
    %193 = vmatpush1.msra.mxu0 %v41
    %194 = vmatprep.subr.mxu0 0.0
    %195 = vmatpush1.msra.mxu0 %v40
    %196 = vmatprep.subr.mxu0 0.0
    %197 = vmatpush1.msra.mxu0 %v39
    %198 = vmatprep.subr.mxu0 0.0
    %199 = vmatpush1.msra.mxu0 %v38
    %200 = vmatprep.subr.mxu0 0.0
    %201 = vmatpush2.msra.mxu0 0.0
    %202 = vmatprep.subr.mxu0 0.0
    %203 = vmatpush2.msra.mxu0 0.0
    %204 = vmatprep.subr.mxu0 0.0
    %205 = vmatpush2.msra.mxu0 0.0
    %206 = vmatprep.subr.mxu0 0.0
    %207 = vmatpush2.msra.mxu0 0.0
    %208 = vmatprep.subr.mxu0 0.0
    %209 = vmatpush2.msra.mxu0 0.0
    %210 = vmatprep.subr.mxu0 0.0
    %211 = vmatpush2.msra.mxu0 0.0
    %212 = vmatprep.subr.mxu0 0.0
    %213 = vmatpush2.msra.mxu0 0.0
    %214 = vmatprep.subr.mxu0 0.0
    %215 = vmatpush2.msra.mxu0 0.0
    %216 = vmatprep.subr.mxu0 0.0
    %217 = vmatpush2.msra.mxu0 0.0
    %218 = vmatprep.subr.mxu0 0.0
    %219 = vmatpush2.msra.mxu0 0.0
    %220 = vmatprep.subr.mxu0 0.0
    %221 = vmatpush2.msra.mxu0 0.0
    %222 = vmatprep.subr.mxu0 0.0
    %223 = vmatpush2.msra.mxu0 0.0
    %224 = vmatprep.subr.mxu0 0.0
    %225 = vmatpush2.msra.mxu0 0.0
    %226 = vmatprep.subr.mxu0 0.0
    %227 = vmatpush2.msra.mxu0 0.0
    %228 = vmatprep.subr.mxu0 0.0
    %229 = vmatpush2.msra.mxu0 0.0
    %230 = vmatprep.subr.mxu0 0.0
    %231 = vmatpush2.msra.mxu0 0.0
    %232 = vmatprep.mubr.f32.mxu0 0.0
    %233 = vmatmul.mubr.f32.gmra.mxu0 %v163
    %v234 = vpop.f32.mrf.mxu0
    %v235 = vadd.f32 %v161, %v234
    %v236 = vpop.f32.mrf.mxu0
    %237 = vmatprep.mubr.f32.mxu0 0.0
    %238 = vmatmul.mubr.f32.gmra.mxu0 %v166
    %v239 = vpop.f32.mrf.mxu0
    %v240 = vadd.f32 %v161, %v239
    %v241 = vpop.f32.mrf.mxu0
    %242 = vdwg.mxu0
    %v243 = vlaneseq
    %v244 = vand.u32 %v243, 127
    %v245 = vlaneseq
    %v246 = vshrl.u32 %v245, 7
    %v247 = vadd.s32 %v246, 8
    %v248 = vxor.u32 %v246, %v244
    %v249 = vxor.u32 %v247, %v244
    %v250 = vand.u32 %v248, 1
    %v251 = vand.u32 %v249, 1
    %vm252 = vcmp.eq.s32.totalorder %v250, 0
    %vm253 = vcmp.eq.s32.totalorder %v251, 0
    %v254 = vsel %vm252, 0.0, -1e+30
    %v255 = vsel %vm253, 0.0, -1e+30
    %vm256 = vcmp.ge.s32.totalorder %v244, 0
    %vm257 = vcmp.lt.s32.totalorder %v244, 8
    %vm258 = vmand %vm256, %vm257
    %vm259 = vcmp.ge.s32.totalorder %v244, 32
    %vm260 = vcmp.lt.s32.totalorder %v244, 40
    %vm261 = vmand %vm259, %vm260
    %v262 = vsel %vm258, 1, 0
    %vm263 = vcmp.eq.s32.totalorder %v262, 1
    %v264 = vsel %vm263, %v150, 0.0
    %v265 = vsel %vm263, %v155, 0.0
    %vm266 = vcmask 523264
    %v268 = vsel %vm266, %v264, 0
    %v271 = vsel %vm266, %v265, 0
    %v274 = vsel %vm266, %v235, 0
    %v277 = vsel %vm266, %v240, 0
    %279 = vmatprep.subr.mxu0 0.0
    %280 = vmatpush1.xpose.msra.mxu0 0.0
    %281 = vmatprep.subr.mxu0 0.0
    %282 = vmatpush1.xpose.msra.mxu0 0.0
    %283 = vmatprep.subr.mxu0 0.0
    %284 = vmatpush1.xpose.msra.mxu0 0.0
    %285 = vmatprep.subr.mxu0 0.0
    %286 = vmatpush1.xpose.msra.mxu0 0.0
    %287 = vmatprep.subr.mxu0 0.0
    %288 = vmatpush1.xpose.msra.mxu0 0.0
    %289 = vmatprep.subr.mxu0 0.0
    %290 = vmatpush1.xpose.msra.mxu0 0.0
    %291 = vmatprep.subr.mxu0 0.0
    %292 = vmatpush1.xpose.msra.mxu0 0.0
    %293 = vmatprep.subr.mxu0 0.0
    %294 = vmatpush1.xpose.msra.mxu0 0.0
    %295 = vmatprep.subr.mxu0 0.0
    %296 = vmatpush1.xpose.msra.mxu0 0.0
    %297 = vmatprep.subr.mxu0 0.0
    %298 = vmatpush1.xpose.msra.mxu0 0.0
    %299 = vmatprep.subr.mxu0 0.0
    %300 = vmatpush1.xpose.msra.mxu0 0.0
    %301 = vmatprep.subr.mxu0 0.0
    %302 = vmatpush1.xpose.msra.mxu0 0.0
    %303 = vmatprep.subr.mxu0 0.0
    %304 = vmatpush1.xpose.msra.mxu0 0.0
    %305 = vmatprep.subr.mxu0 0.0
    %306 = vmatpush1.xpose.msra.mxu0 0.0
    %307 = vmatprep.subr.mxu0 0.0
    %308 = vmatpush1.xpose.msra.mxu0 %v277
    %309 = vmatprep.subr.mxu0 0.0
    %310 = vmatpush1.xpose.msra.mxu0 %v274
    %311 = vmatprep.subr.mxu0 0.0
    %312 = vmatpush2.xpose.msra.mxu0 0.0
    %313 = vmatprep.subr.mxu0 0.0
    %314 = vmatpush2.xpose.msra.mxu0 0.0
    %315 = vmatprep.subr.mxu0 0.0
    %316 = vmatpush2.xpose.msra.mxu0 0.0
    %317 = vmatprep.subr.mxu0 0.0
    %318 = vmatpush2.xpose.msra.mxu0 0.0
    %319 = vmatprep.subr.mxu0 0.0
    %320 = vmatpush2.xpose.msra.mxu0 0.0
    %321 = vmatprep.subr.mxu0 0.0
    %322 = vmatpush2.xpose.msra.mxu0 0.0
    %323 = vmatprep.subr.mxu0 0.0
    %324 = vmatpush2.xpose.msra.mxu0 0.0
    %325 = vmatprep.subr.mxu0 0.0
    %326 = vmatpush2.xpose.msra.mxu0 0.0
    %327 = vmatprep.subr.mxu0 0.0
    %328 = vmatpush2.xpose.msra.mxu0 0.0
    %329 = vmatprep.subr.mxu0 0.0
    %330 = vmatpush2.xpose.msra.mxu0 0.0
    %331 = vmatprep.subr.mxu0 0.0
    %332 = vmatpush2.xpose.msra.mxu0 0.0
    %333 = vmatprep.subr.mxu0 0.0
    %334 = vmatpush2.xpose.msra.mxu0 0.0
    %335 = vmatprep.subr.mxu0 0.0
    %336 = vmatpush2.xpose.msra.mxu0 0.0
    %337 = vmatprep.subr.mxu0 0.0
    %338 = vmatpush2.xpose.msra.mxu0 0.0
    %339 = vmatprep.subr.mxu0 0.0
    %340 = vmatpush2.xpose.msra.mxu0 0.0
    %341 = vmatprep.subr.mxu0 0.0
    %342 = vmatpush2.xpose.msra.mxu0 0.0
    %343 = vmatprep.mubr.f32.mxu0 0.0
    %344 = vmatmul.mubr.f32.gmra.mxu0 %v268
    %v345 = vpop.f32.mrf.mxu0
    %v346 = vadd.f32 %v254, %v345
    %v347 = vpop.f32.mrf.mxu0
    %348 = vmatprep.mubr.f32.mxu0 0.0
    %349 = vmatmul.mubr.f32.gmra.mxu0 %v271
    %v350 = vpop.f32.mrf.mxu0
    %v351 = vadd.f32 %v255, %v350
    %v352 = vpop.f32.mrf.mxu0
    %353 = vdwg.mxu0
    %vm354 = vcmask 130048
    %v355 = vsel %vm354, %v346, -inf
    %356 = vmax.xlane.f32.xlu0 %v355
    %v357 = vpop.xlane.xlu0 %356
    %v358 = vsel %vm354, %v351, -inf
    %359 = vmax.xlane.f32.xlu0 %v358
    %v360 = vpop.xlane.xlu0 %359
    %v361 = vsub.f32 %v346, %v357
    %v362 = vsub.f32 %v351, %v360
    %v363 = vmul.f32 %v361, 1.442695
    %v364 = vpow.pop %v363
    %v365 = vmul.f32 %v362, 1.442695
    %v366 = vpow.pop %v365
    %v367 = vsel %vm354, %v364, 0.0
    %368 = vadd.xlane.f32.xlu0 %v367
    %v369 = vpop.xlane.xlu0 %368
    %v370 = vsel %vm354, %v366, 0.0
    %371 = vadd.xlane.f32.xlu0 %v370
    %v372 = vpop.xlane.xlu0 %371
    %v373 = vrcp.pop %v369
    %v374 = vrcp.pop %v372
    %v375 = vmul.f32 %v364, %v373
    %v376 = vmul.f32 %v366, %v374
    %v377 = vsel %vm261, 1, 0
    %vm378 = vcmp.eq.s32.totalorder %v377, 1
    %v379 = vsel %vm378, %v235, 0.0
    %v380 = vsel %vm378, %v240, 0.0
    %vm381 = vcmp.ge.s32.totalorder %v244, 8
    %vm382 = vcmp.lt.s32.totalorder %v244, 16
    %vm383 = vmand %vm381, %vm382
    %vm384 = vcmp.ge.s32.totalorder %v244, 40
    %vm385 = vcmp.lt.s32.totalorder %v244, 48
    %vm386 = vmand %vm384, %vm385
    %v387 = vsel %vm383, 1, 0
    %vm388 = vcmp.eq.s32.totalorder %v387, 1
    %v389 = vsel %vm388, %v150, 0.0
    %v390 = vsel %vm388, %v155, 0.0
    %v392 = vsel %vm266, %v389, 0
    %v395 = vsel %vm266, %v390, 0
    %397 = vmatprep.subr.mxu0 0.0
    %398 = vmatpush1.xpose.msra.mxu0 0.0
    %399 = vmatprep.subr.mxu0 0.0
    %400 = vmatpush1.xpose.msra.mxu0 0.0
    %401 = vmatprep.subr.mxu0 0.0
    %402 = vmatpush1.xpose.msra.mxu0 0.0
    %403 = vmatprep.subr.mxu0 0.0
    %404 = vmatpush1.xpose.msra.mxu0 0.0
    %405 = vmatprep.subr.mxu0 0.0
    %406 = vmatpush1.xpose.msra.mxu0 0.0
    %407 = vmatprep.subr.mxu0 0.0
    %408 = vmatpush1.xpose.msra.mxu0 0.0
    %409 = vmatprep.subr.mxu0 0.0
    %410 = vmatpush1.xpose.msra.mxu0 0.0
    %411 = vmatprep.subr.mxu0 0.0
    %412 = vmatpush1.xpose.msra.mxu0 0.0
    %413 = vmatprep.subr.mxu0 0.0
    %414 = vmatpush1.xpose.msra.mxu0 0.0
    %415 = vmatprep.subr.mxu0 0.0
    %416 = vmatpush1.xpose.msra.mxu0 0.0
    %417 = vmatprep.subr.mxu0 0.0
    %418 = vmatpush1.xpose.msra.mxu0 0.0
    %419 = vmatprep.subr.mxu0 0.0
    %420 = vmatpush1.xpose.msra.mxu0 0.0
    %421 = vmatprep.subr.mxu0 0.0
    %422 = vmatpush1.xpose.msra.mxu0 0.0
    %423 = vmatprep.subr.mxu0 0.0
    %424 = vmatpush1.xpose.msra.mxu0 0.0
    %425 = vmatprep.subr.mxu0 0.0
    %426 = vmatpush1.xpose.msra.mxu0 %v277
    %427 = vmatprep.subr.mxu0 0.0
    %428 = vmatpush1.xpose.msra.mxu0 %v274
    %429 = vmatprep.subr.mxu0 0.0
    %430 = vmatpush2.xpose.msra.mxu0 0.0
    %431 = vmatprep.subr.mxu0 0.0
    %432 = vmatpush2.xpose.msra.mxu0 0.0
    %433 = vmatprep.subr.mxu0 0.0
    %434 = vmatpush2.xpose.msra.mxu0 0.0
    %435 = vmatprep.subr.mxu0 0.0
    %436 = vmatpush2.xpose.msra.mxu0 0.0
    %437 = vmatprep.subr.mxu0 0.0
    %438 = vmatpush2.xpose.msra.mxu0 0.0
    %439 = vmatprep.subr.mxu0 0.0
    %440 = vmatpush2.xpose.msra.mxu0 0.0
    %441 = vmatprep.subr.mxu0 0.0
    %442 = vmatpush2.xpose.msra.mxu0 0.0
    %443 = vmatprep.subr.mxu0 0.0
    %444 = vmatpush2.xpose.msra.mxu0 0.0
    %445 = vmatprep.subr.mxu0 0.0
    %446 = vmatpush2.xpose.msra.mxu0 0.0
    %447 = vmatprep.subr.mxu0 0.0
    %448 = vmatpush2.xpose.msra.mxu0 0.0
    %449 = vmatprep.subr.mxu0 0.0
    %450 = vmatpush2.xpose.msra.mxu0 0.0
    %451 = vmatprep.subr.mxu0 0.0
    %452 = vmatpush2.xpose.msra.mxu0 0.0
    %453 = vmatprep.subr.mxu0 0.0
    %454 = vmatpush2.xpose.msra.mxu0 0.0
    %455 = vmatprep.subr.mxu0 0.0
    %456 = vmatpush2.xpose.msra.mxu0 0.0
    %457 = vmatprep.subr.mxu0 0.0
    %458 = vmatpush2.xpose.msra.mxu0 0.0
    %459 = vmatprep.subr.mxu0 0.0
    %460 = vmatpush2.xpose.msra.mxu0 0.0
    %461 = vmatprep.mubr.f32.mxu0 0.0
    %462 = vmatmul.mubr.f32.gmra.mxu0 %v392
    %v463 = vpop.f32.mrf.mxu0
    %v464 = vadd.f32 %v254, %v463
    %v465 = vpop.f32.mrf.mxu0
    %466 = vmatprep.mubr.f32.mxu0 0.0
    %467 = vmatmul.mubr.f32.gmra.mxu0 %v395
    %v468 = vpop.f32.mrf.mxu0
    %v469 = vadd.f32 %v255, %v468
    %v470 = vpop.f32.mrf.mxu0
    %471 = vdwg.mxu0
    %v472 = vsel %vm354, %v464, -inf
    %473 = vmax.xlane.f32.xlu0 %v472
    %v474 = vpop.xlane.xlu0 %473
    %v475 = vsel %vm354, %v469, -inf
    %476 = vmax.xlane.f32.xlu0 %v475
    %v477 = vpop.xlane.xlu0 %476
    %v478 = vsub.f32 %v464, %v474
    %v479 = vsub.f32 %v469, %v477
    %v480 = vmul.f32 %v478, 1.442695
    %v481 = vpow.pop %v480
    %v482 = vmul.f32 %v479, 1.442695
    %v483 = vpow.pop %v482
    %v484 = vsel %vm354, %v481, 0.0
    %485 = vadd.xlane.f32.xlu0 %v484
    %v486 = vpop.xlane.xlu0 %485
    %v487 = vsel %vm354, %v483, 0.0
    %488 = vadd.xlane.f32.xlu0 %v487
    %v489 = vpop.xlane.xlu0 %488
    %v490 = vrcp.pop %v486
    %v491 = vrcp.pop %v489
    %v492 = vmul.f32 %v481, %v490
    %v493 = vmul.f32 %v483, %v491
    %v494 = vsel %vm386, 1, 0
    %vm495 = vcmp.eq.s32.totalorder %v494, 1
    %v496 = vsel %vm495, %v235, 0.0
    %v497 = vsel %vm495, %v240, 0.0
    %v499 = vsel %vm354, %v492, 0
    %v502 = vsel %vm354, %v493, 0
    %504 = vmatprep.subr.mxu0 0.0
    %505 = vmatpush1.msra.mxu0 0.0
    %506 = vmatprep.subr.mxu0 0.0
    %507 = vmatpush1.msra.mxu0 0.0
    %508 = vmatprep.subr.mxu0 0.0
    %509 = vmatpush1.msra.mxu0 0.0
    %510 = vmatprep.subr.mxu0 0.0
    %511 = vmatpush1.msra.mxu0 0.0
    %512 = vmatprep.subr.mxu0 0.0
    %513 = vmatpush1.msra.mxu0 0.0
    %514 = vmatprep.subr.mxu0 0.0
    %515 = vmatpush1.msra.mxu0 0.0
    %516 = vmatprep.subr.mxu0 0.0
    %517 = vmatpush1.msra.mxu0 0.0
    %518 = vmatprep.subr.mxu0 0.0
    %519 = vmatpush1.msra.mxu0 0.0
    %520 = vmatprep.subr.mxu0 0.0
    %521 = vmatpush1.msra.mxu0 0.0
    %522 = vmatprep.subr.mxu0 0.0
    %523 = vmatpush1.msra.mxu0 0.0
    %524 = vmatprep.subr.mxu0 0.0
    %525 = vmatpush1.msra.mxu0 0.0
    %526 = vmatprep.subr.mxu0 0.0
    %527 = vmatpush1.msra.mxu0 0.0
    %528 = vmatprep.subr.mxu0 0.0
    %529 = vmatpush1.msra.mxu0 0.0
    %530 = vmatprep.subr.mxu0 0.0
    %531 = vmatpush1.msra.mxu0 0.0
    %532 = vmatprep.subr.mxu0 0.0
    %533 = vmatpush1.msra.mxu0 %v497
    %534 = vmatprep.subr.mxu0 0.0
    %535 = vmatpush1.msra.mxu0 %v496
    %536 = vmatprep.subr.mxu0 0.0
    %537 = vmatpush2.msra.mxu0 0.0
    %538 = vmatprep.subr.mxu0 0.0
    %539 = vmatpush2.msra.mxu0 0.0
    %540 = vmatprep.subr.mxu0 0.0
    %541 = vmatpush2.msra.mxu0 0.0
    %542 = vmatprep.subr.mxu0 0.0
    %543 = vmatpush2.msra.mxu0 0.0
    %544 = vmatprep.subr.mxu0 0.0
    %545 = vmatpush2.msra.mxu0 0.0
    %546 = vmatprep.subr.mxu0 0.0
    %547 = vmatpush2.msra.mxu0 0.0
    %548 = vmatprep.subr.mxu0 0.0
    %549 = vmatpush2.msra.mxu0 0.0
    %550 = vmatprep.subr.mxu0 0.0
    %551 = vmatpush2.msra.mxu0 0.0
    %552 = vmatprep.subr.mxu0 0.0
    %553 = vmatpush2.msra.mxu0 0.0
    %554 = vmatprep.subr.mxu0 0.0
    %555 = vmatpush2.msra.mxu0 0.0
    %556 = vmatprep.subr.mxu0 0.0
    %557 = vmatpush2.msra.mxu0 0.0
    %558 = vmatprep.subr.mxu0 0.0
    %559 = vmatpush2.msra.mxu0 0.0
    %560 = vmatprep.subr.mxu0 0.0
    %561 = vmatpush2.msra.mxu0 0.0
    %562 = vmatprep.subr.mxu0 0.0
    %563 = vmatpush2.msra.mxu0 0.0
    %564 = vmatprep.subr.mxu0 0.0
    %565 = vmatpush2.msra.mxu0 0.0
    %566 = vmatprep.subr.mxu0 0.0
    %567 = vmatpush2.msra.mxu0 0.0
    %568 = vmatprep.mubr.f32.mxu0 0.0
    %569 = vmatmul.mubr.f32.gmra.mxu0 %v499
    %v570 = vpop.f32.mrf.mxu0
    %v571 = vadd.f32 0.0, %v570
    %v572 = vpop.f32.mrf.mxu0
    %573 = vmatprep.mubr.f32.mxu0 0.0
    %574 = vmatmul.mubr.f32.gmra.mxu0 %v502
    %v575 = vpop.f32.mrf.mxu0
    %v576 = vadd.f32 0.0, %v575
    %v577 = vpop.f32.mrf.mxu0
    %578 = vdwg.mxu0
    %v580 = vsel %vm354, %v375, 0
    %v583 = vsel %vm354, %v376, 0
    %585 = vmatprep.subr.mxu0 0.0
    %586 = vmatpush1.msra.mxu0 0.0
    %587 = vmatprep.subr.mxu0 0.0
    %588 = vmatpush1.msra.mxu0 0.0
    %589 = vmatprep.subr.mxu0 0.0
    %590 = vmatpush1.msra.mxu0 0.0
    %591 = vmatprep.subr.mxu0 0.0
    %592 = vmatpush1.msra.mxu0 0.0
    %593 = vmatprep.subr.mxu0 0.0
    %594 = vmatpush1.msra.mxu0 0.0
    %595 = vmatprep.subr.mxu0 0.0
    %596 = vmatpush1.msra.mxu0 0.0
    %597 = vmatprep.subr.mxu0 0.0
    %598 = vmatpush1.msra.mxu0 0.0
    %599 = vmatprep.subr.mxu0 0.0
    %600 = vmatpush1.msra.mxu0 0.0
    %601 = vmatprep.subr.mxu0 0.0
    %602 = vmatpush1.msra.mxu0 0.0
    %603 = vmatprep.subr.mxu0 0.0
    %604 = vmatpush1.msra.mxu0 0.0
    %605 = vmatprep.subr.mxu0 0.0
    %606 = vmatpush1.msra.mxu0 0.0
    %607 = vmatprep.subr.mxu0 0.0
    %608 = vmatpush1.msra.mxu0 0.0
    %609 = vmatprep.subr.mxu0 0.0
    %610 = vmatpush1.msra.mxu0 0.0
    %611 = vmatprep.subr.mxu0 0.0
    %612 = vmatpush1.msra.mxu0 0.0
    %613 = vmatprep.subr.mxu0 0.0
    %614 = vmatpush1.msra.mxu0 %v380
    %615 = vmatprep.subr.mxu0 0.0
    %616 = vmatpush1.msra.mxu0 %v379
    %617 = vmatprep.subr.mxu0 0.0
    %618 = vmatpush2.msra.mxu0 0.0
    %619 = vmatprep.subr.mxu0 0.0
    %620 = vmatpush2.msra.mxu0 0.0
    %621 = vmatprep.subr.mxu0 0.0
    %622 = vmatpush2.msra.mxu0 0.0
    %623 = vmatprep.subr.mxu0 0.0
    %624 = vmatpush2.msra.mxu0 0.0
    %625 = vmatprep.subr.mxu0 0.0
    %626 = vmatpush2.msra.mxu0 0.0
    %627 = vmatprep.subr.mxu0 0.0
    %628 = vmatpush2.msra.mxu0 0.0
    %629 = vmatprep.subr.mxu0 0.0
    %630 = vmatpush2.msra.mxu0 0.0
    %631 = vmatprep.subr.mxu0 0.0
    %632 = vmatpush2.msra.mxu0 0.0
    %633 = vmatprep.subr.mxu0 0.0
    %634 = vmatpush2.msra.mxu0 0.0
    %635 = vmatprep.subr.mxu0 0.0
    %636 = vmatpush2.msra.mxu0 0.0
    %637 = vmatprep.subr.mxu0 0.0
    %638 = vmatpush2.msra.mxu0 0.0
    %639 = vmatprep.subr.mxu0 0.0
    %640 = vmatpush2.msra.mxu0 0.0
    %641 = vmatprep.subr.mxu0 0.0
    %642 = vmatpush2.msra.mxu0 0.0
    %643 = vmatprep.subr.mxu0 0.0
    %644 = vmatpush2.msra.mxu0 0.0
    %645 = vmatprep.subr.mxu0 0.0
    %646 = vmatpush2.msra.mxu0 0.0
    %647 = vmatprep.subr.mxu0 0.0
    %648 = vmatpush2.msra.mxu0 0.0
    %649 = vmatprep.mubr.f32.mxu0 0.0
    %650 = vmatmul.mubr.f32.gmra.mxu0 %v580
    %v651 = vpop.f32.mrf.mxu0
    %v652 = vadd.f32 %v571, %v651
    %v653 = vpop.f32.mrf.mxu0
    %654 = vmatprep.mubr.f32.mxu0 0.0
    %655 = vmatmul.mubr.f32.gmra.mxu0 %v583
    %v656 = vpop.f32.mrf.mxu0
    %v657 = vadd.f32 %v576, %v656
    %v658 = vpop.f32.mrf.mxu0
    %659 = vdwg.mxu0
    %vm660 = vcmp.ge.s32.totalorder %v244, 16
    %vm661 = vcmp.lt.s32.totalorder %v244, 24
    %vm662 = vmand %vm660, %vm661
    %vm663 = vcmp.ge.s32.totalorder %v244, 48
    %vm664 = vcmp.lt.s32.totalorder %v244, 56
    %vm665 = vmand %vm663, %vm664
    %v666 = vsel %vm662, 1, 0
    %vm667 = vcmp.eq.s32.totalorder %v666, 1
    %v668 = vsel %vm667, %v150, 0.0
    %v669 = vsel %vm667, %v155, 0.0
    %v671 = vsel %vm266, %v668, 0
    %v674 = vsel %vm266, %v669, 0
    %676 = vmatprep.subr.mxu0 0.0
    %677 = vmatpush1.xpose.msra.mxu0 0.0
    %678 = vmatprep.subr.mxu0 0.0
    %679 = vmatpush1.xpose.msra.mxu0 0.0
    %680 = vmatprep.subr.mxu0 0.0
    %681 = vmatpush1.xpose.msra.mxu0 0.0
    %682 = vmatprep.subr.mxu0 0.0
    %683 = vmatpush1.xpose.msra.mxu0 0.0
    %684 = vmatprep.subr.mxu0 0.0
    %685 = vmatpush1.xpose.msra.mxu0 0.0
    %686 = vmatprep.subr.mxu0 0.0
    %687 = vmatpush1.xpose.msra.mxu0 0.0
    %688 = vmatprep.subr.mxu0 0.0
    %689 = vmatpush1.xpose.msra.mxu0 0.0
    %690 = vmatprep.subr.mxu0 0.0
    %691 = vmatpush1.xpose.msra.mxu0 0.0
    %692 = vmatprep.subr.mxu0 0.0
    %693 = vmatpush1.xpose.msra.mxu0 0.0
    %694 = vmatprep.subr.mxu0 0.0
    %695 = vmatpush1.xpose.msra.mxu0 0.0
    %696 = vmatprep.subr.mxu0 0.0
    %697 = vmatpush1.xpose.msra.mxu0 0.0
    %698 = vmatprep.subr.mxu0 0.0
    %699 = vmatpush1.xpose.msra.mxu0 0.0
    %700 = vmatprep.subr.mxu0 0.0
    %701 = vmatpush1.xpose.msra.mxu0 0.0
    %702 = vmatprep.subr.mxu0 0.0
    %703 = vmatpush1.xpose.msra.mxu0 0.0
    %704 = vmatprep.subr.mxu0 0.0
    %705 = vmatpush1.xpose.msra.mxu0 %v277
    %706 = vmatprep.subr.mxu0 0.0
    %707 = vmatpush1.xpose.msra.mxu0 %v274
    %708 = vmatprep.subr.mxu0 0.0
    %709 = vmatpush2.xpose.msra.mxu0 0.0
    %710 = vmatprep.subr.mxu0 0.0
    %711 = vmatpush2.xpose.msra.mxu0 0.0
    %712 = vmatprep.subr.mxu0 0.0
    %713 = vmatpush2.xpose.msra.mxu0 0.0
    %714 = vmatprep.subr.mxu0 0.0
    %715 = vmatpush2.xpose.msra.mxu0 0.0
    %716 = vmatprep.subr.mxu0 0.0
    %717 = vmatpush2.xpose.msra.mxu0 0.0
    %718 = vmatprep.subr.mxu0 0.0
    %719 = vmatpush2.xpose.msra.mxu0 0.0
    %720 = vmatprep.subr.mxu0 0.0
    %721 = vmatpush2.xpose.msra.mxu0 0.0
    %722 = vmatprep.subr.mxu0 0.0
    %723 = vmatpush2.xpose.msra.mxu0 0.0
    %724 = vmatprep.subr.mxu0 0.0
    %725 = vmatpush2.xpose.msra.mxu0 0.0
    %726 = vmatprep.subr.mxu0 0.0
    %727 = vmatpush2.xpose.msra.mxu0 0.0
    %728 = vmatprep.subr.mxu0 0.0
    %729 = vmatpush2.xpose.msra.mxu0 0.0
    %730 = vmatprep.subr.mxu0 0.0
    %731 = vmatpush2.xpose.msra.mxu0 0.0
    %732 = vmatprep.subr.mxu0 0.0
    %733 = vmatpush2.xpose.msra.mxu0 0.0
    %734 = vmatprep.subr.mxu0 0.0
    %735 = vmatpush2.xpose.msra.mxu0 0.0
    %736 = vmatprep.subr.mxu0 0.0
    %737 = vmatpush2.xpose.msra.mxu0 0.0
    %738 = vmatprep.subr.mxu0 0.0
    %739 = vmatpush2.xpose.msra.mxu0 0.0
    %740 = vmatprep.mubr.f32.mxu0 0.0
    %741 = vmatmul.mubr.f32.gmra.mxu0 %v671
    %v742 = vpop.f32.mrf.mxu0
    %v743 = vadd.f32 %v254, %v742
    %v744 = vpop.f32.mrf.mxu0
    %745 = vmatprep.mubr.f32.mxu0 0.0
    %746 = vmatmul.mubr.f32.gmra.mxu0 %v674
    %v747 = vpop.f32.mrf.mxu0
    %v748 = vadd.f32 %v255, %v747
    %v749 = vpop.f32.mrf.mxu0
    %750 = vdwg.mxu0
    %v751 = vsel %vm354, %v743, -inf
    %752 = vmax.xlane.f32.xlu0 %v751
    %v753 = vpop.xlane.xlu0 %752
    %v754 = vsel %vm354, %v748, -inf
    %755 = vmax.xlane.f32.xlu0 %v754
    %v756 = vpop.xlane.xlu0 %755
    %v757 = vsub.f32 %v743, %v753
    %v758 = vsub.f32 %v748, %v756
    %v759 = vmul.f32 %v757, 1.442695
    %v760 = vpow.pop %v759
    %v761 = vmul.f32 %v758, 1.442695
    %v762 = vpow.pop %v761
    %v763 = vsel %vm354, %v760, 0.0
    %764 = vadd.xlane.f32.xlu0 %v763
    %v765 = vpop.xlane.xlu0 %764
    %v766 = vsel %vm354, %v762, 0.0
    %767 = vadd.xlane.f32.xlu0 %v766
    %v768 = vpop.xlane.xlu0 %767
    %v769 = vrcp.pop %v765
    %v770 = vrcp.pop %v768
    %v771 = vmul.f32 %v760, %v769
    %v772 = vmul.f32 %v762, %v770
    %v773 = vsel %vm665, 1, 0
    %vm774 = vcmp.eq.s32.totalorder %v773, 1
    %v775 = vsel %vm774, %v235, 0.0
    %v776 = vsel %vm774, %v240, 0.0
    %v778 = vsel %vm354, %v771, 0
    %v781 = vsel %vm354, %v772, 0
    %783 = vmatprep.subr.mxu0 0.0
    %784 = vmatpush1.msra.mxu0 0.0
    %785 = vmatprep.subr.mxu0 0.0
    %786 = vmatpush1.msra.mxu0 0.0
    %787 = vmatprep.subr.mxu0 0.0
    %788 = vmatpush1.msra.mxu0 0.0
    %789 = vmatprep.subr.mxu0 0.0
    %790 = vmatpush1.msra.mxu0 0.0
    %791 = vmatprep.subr.mxu0 0.0
    %792 = vmatpush1.msra.mxu0 0.0
    %793 = vmatprep.subr.mxu0 0.0
    %794 = vmatpush1.msra.mxu0 0.0
    %795 = vmatprep.subr.mxu0 0.0
    %796 = vmatpush1.msra.mxu0 0.0
    %797 = vmatprep.subr.mxu0 0.0
    %798 = vmatpush1.msra.mxu0 0.0
    %799 = vmatprep.subr.mxu0 0.0
    %800 = vmatpush1.msra.mxu0 0.0
    %801 = vmatprep.subr.mxu0 0.0
    %802 = vmatpush1.msra.mxu0 0.0
    %803 = vmatprep.subr.mxu0 0.0
    %804 = vmatpush1.msra.mxu0 0.0
    %805 = vmatprep.subr.mxu0 0.0
    %806 = vmatpush1.msra.mxu0 0.0
    %807 = vmatprep.subr.mxu0 0.0
    %808 = vmatpush1.msra.mxu0 0.0
    %809 = vmatprep.subr.mxu0 0.0
    %810 = vmatpush1.msra.mxu0 0.0
    %811 = vmatprep.subr.mxu0 0.0
    %812 = vmatpush1.msra.mxu0 %v776
    %813 = vmatprep.subr.mxu0 0.0
    %814 = vmatpush1.msra.mxu0 %v775
    %815 = vmatprep.subr.mxu0 0.0
    %816 = vmatpush2.msra.mxu0 0.0
    %817 = vmatprep.subr.mxu0 0.0
    %818 = vmatpush2.msra.mxu0 0.0
    %819 = vmatprep.subr.mxu0 0.0
    %820 = vmatpush2.msra.mxu0 0.0
    %821 = vmatprep.subr.mxu0 0.0
    %822 = vmatpush2.msra.mxu0 0.0
    %823 = vmatprep.subr.mxu0 0.0
    %824 = vmatpush2.msra.mxu0 0.0
    %825 = vmatprep.subr.mxu0 0.0
    %826 = vmatpush2.msra.mxu0 0.0
    %827 = vmatprep.subr.mxu0 0.0
    %828 = vmatpush2.msra.mxu0 0.0
    %829 = vmatprep.subr.mxu0 0.0
    %830 = vmatpush2.msra.mxu0 0.0
    %831 = vmatprep.subr.mxu0 0.0
    %832 = vmatpush2.msra.mxu0 0.0
    %833 = vmatprep.subr.mxu0 0.0
    %834 = vmatpush2.msra.mxu0 0.0
    %835 = vmatprep.subr.mxu0 0.0
    %836 = vmatpush2.msra.mxu0 0.0
    %837 = vmatprep.subr.mxu0 0.0
    %838 = vmatpush2.msra.mxu0 0.0
    %839 = vmatprep.subr.mxu0 0.0
    %840 = vmatpush2.msra.mxu0 0.0
    %841 = vmatprep.subr.mxu0 0.0
    %842 = vmatpush2.msra.mxu0 0.0
    %843 = vmatprep.subr.mxu0 0.0
    %844 = vmatpush2.msra.mxu0 0.0
    %845 = vmatprep.subr.mxu0 0.0
    %846 = vmatpush2.msra.mxu0 0.0
    %847 = vmatprep.mubr.f32.mxu0 0.0
    %848 = vmatmul.mubr.f32.gmra.mxu0 %v778
    %v849 = vpop.f32.mrf.mxu0
    %v850 = vadd.f32 0.0, %v849
    %v851 = vpop.f32.mrf.mxu0
    %852 = vmatprep.mubr.f32.mxu0 0.0
    %853 = vmatmul.mubr.f32.gmra.mxu0 %v781
    %v854 = vpop.f32.mrf.mxu0
    %v855 = vadd.f32 0.0, %v854
    %v856 = vpop.f32.mrf.mxu0
    %857 = vdwg.mxu0
    %v858 = vadd.f32 %v652, %v850
    %v859 = vadd.f32 %v657, %v855
    %vm860 = vcmp.ge.s32.totalorder %v244, 24
    %vm861 = vcmp.lt.s32.totalorder %v244, 32
    %vm862 = vmand %vm860, %vm861
    %vm863 = vcmp.ge.s32.totalorder %v244, 56
    %vm864 = vcmp.lt.s32.totalorder %v244, 64
    %vm865 = vmand %vm863, %vm864
    %v866 = vsel %vm862, 1, 0
    %vm867 = vcmp.eq.s32.totalorder %v866, 1
    %v868 = vsel %vm867, %v150, 0.0
    %v869 = vsel %vm867, %v155, 0.0
    %v871 = vsel %vm266, %v868, 0
    %v874 = vsel %vm266, %v869, 0
    %876 = vmatprep.subr.mxu0 0.0
    %877 = vmatpush1.xpose.msra.mxu0 0.0
    %878 = vmatprep.subr.mxu0 0.0
    %879 = vmatpush1.xpose.msra.mxu0 0.0
    %880 = vmatprep.subr.mxu0 0.0
    %881 = vmatpush1.xpose.msra.mxu0 0.0
    %882 = vmatprep.subr.mxu0 0.0
    %883 = vmatpush1.xpose.msra.mxu0 0.0
    %884 = vmatprep.subr.mxu0 0.0
    %885 = vmatpush1.xpose.msra.mxu0 0.0
    %886 = vmatprep.subr.mxu0 0.0
    %887 = vmatpush1.xpose.msra.mxu0 0.0
    %888 = vmatprep.subr.mxu0 0.0
    %889 = vmatpush1.xpose.msra.mxu0 0.0
    %890 = vmatprep.subr.mxu0 0.0
    %891 = vmatpush1.xpose.msra.mxu0 0.0
    %892 = vmatprep.subr.mxu0 0.0
    %893 = vmatpush1.xpose.msra.mxu0 0.0
    %894 = vmatprep.subr.mxu0 0.0
    %895 = vmatpush1.xpose.msra.mxu0 0.0
    %896 = vmatprep.subr.mxu0 0.0
    %897 = vmatpush1.xpose.msra.mxu0 0.0
    %898 = vmatprep.subr.mxu0 0.0
    %899 = vmatpush1.xpose.msra.mxu0 0.0
    %900 = vmatprep.subr.mxu0 0.0
    %901 = vmatpush1.xpose.msra.mxu0 0.0
    %902 = vmatprep.subr.mxu0 0.0
    %903 = vmatpush1.xpose.msra.mxu0 0.0
    %904 = vmatprep.subr.mxu0 0.0
    %905 = vmatpush1.xpose.msra.mxu0 %v277
    %906 = vmatprep.subr.mxu0 0.0
    %907 = vmatpush1.xpose.msra.mxu0 %v274
    %908 = vmatprep.subr.mxu0 0.0
    %909 = vmatpush2.xpose.msra.mxu0 0.0
    %910 = vmatprep.subr.mxu0 0.0
    %911 = vmatpush2.xpose.msra.mxu0 0.0
    %912 = vmatprep.subr.mxu0 0.0
    %913 = vmatpush2.xpose.msra.mxu0 0.0
    %914 = vmatprep.subr.mxu0 0.0
    %915 = vmatpush2.xpose.msra.mxu0 0.0
    %916 = vmatprep.subr.mxu0 0.0
    %917 = vmatpush2.xpose.msra.mxu0 0.0
    %918 = vmatprep.subr.mxu0 0.0
    %919 = vmatpush2.xpose.msra.mxu0 0.0
    %920 = vmatprep.subr.mxu0 0.0
    %921 = vmatpush2.xpose.msra.mxu0 0.0
    %922 = vmatprep.subr.mxu0 0.0
    %923 = vmatpush2.xpose.msra.mxu0 0.0
    %924 = vmatprep.subr.mxu0 0.0
    %925 = vmatpush2.xpose.msra.mxu0 0.0
    %926 = vmatprep.subr.mxu0 0.0
    %927 = vmatpush2.xpose.msra.mxu0 0.0
    %928 = vmatprep.subr.mxu0 0.0
    %929 = vmatpush2.xpose.msra.mxu0 0.0
    %930 = vmatprep.subr.mxu0 0.0
    %931 = vmatpush2.xpose.msra.mxu0 0.0
    %932 = vmatprep.subr.mxu0 0.0
    %933 = vmatpush2.xpose.msra.mxu0 0.0
    %934 = vmatprep.subr.mxu0 0.0
    %935 = vmatpush2.xpose.msra.mxu0 0.0
    %936 = vmatprep.subr.mxu0 0.0
    %937 = vmatpush2.xpose.msra.mxu0 0.0
    %938 = vmatprep.subr.mxu0 0.0
    %939 = vmatpush2.xpose.msra.mxu0 0.0
    %940 = vmatprep.mubr.f32.mxu0 0.0
    %941 = vmatmul.mubr.f32.gmra.mxu0 %v871
    %v942 = vpop.f32.mrf.mxu0
    %v943 = vadd.f32 %v254, %v942
    %v944 = vpop.f32.mrf.mxu0
    %945 = vmatprep.mubr.f32.mxu0 0.0
    %946 = vmatmul.mubr.f32.gmra.mxu0 %v874
    %v947 = vpop.f32.mrf.mxu0
    %v948 = vadd.f32 %v255, %v947
    %v949 = vpop.f32.mrf.mxu0
    %950 = vdwg.mxu0
    %v951 = vsel %vm354, %v943, -inf
    %952 = vmax.xlane.f32.xlu0 %v951
    %v953 = vpop.xlane.xlu0 %952
    %v954 = vsel %vm354, %v948, -inf
    %955 = vmax.xlane.f32.xlu0 %v954
    %v956 = vpop.xlane.xlu0 %955
    %v957 = vsub.f32 %v943, %v953
    %v958 = vsub.f32 %v948, %v956
    %v959 = vmul.f32 %v957, 1.442695
    %v960 = vpow.pop %v959
    %v961 = vmul.f32 %v958, 1.442695
    %v962 = vpow.pop %v961
    %v963 = vsel %vm354, %v960, 0.0
    %964 = vadd.xlane.f32.xlu0 %v963
    %v965 = vpop.xlane.xlu0 %964
    %v966 = vsel %vm354, %v962, 0.0
    %967 = vadd.xlane.f32.xlu0 %v966
    %v968 = vpop.xlane.xlu0 %967
    %v969 = vrcp.pop %v965
    %v970 = vrcp.pop %v968
    %v971 = vmul.f32 %v960, %v969
    %v972 = vmul.f32 %v962, %v970
    %v973 = vsel %vm865, 1, 0
    %vm974 = vcmp.eq.s32.totalorder %v973, 1
    %v975 = vsel %vm974, %v235, 0.0
    %v976 = vsel %vm974, %v240, 0.0
    %v978 = vsel %vm354, %v971, 0
    %v981 = vsel %vm354, %v972, 0
    %983 = vmatprep.subr.mxu0 0.0
    %984 = vmatpush1.msra.mxu0 0.0
    %985 = vmatprep.subr.mxu0 0.0
    %986 = vmatpush1.msra.mxu0 0.0
    %987 = vmatprep.subr.mxu0 0.0
    %988 = vmatpush1.msra.mxu0 0.0
    %989 = vmatprep.subr.mxu0 0.0
    %990 = vmatpush1.msra.mxu0 0.0
    %991 = vmatprep.subr.mxu0 0.0
    %992 = vmatpush1.msra.mxu0 0.0
    %993 = vmatprep.subr.mxu0 0.0
    %994 = vmatpush1.msra.mxu0 0.0
    %995 = vmatprep.subr.mxu0 0.0
    %996 = vmatpush1.msra.mxu0 0.0
    %997 = vmatprep.subr.mxu0 0.0
    %998 = vmatpush1.msra.mxu0 0.0
    %999 = vmatprep.subr.mxu0 0.0
    %1000 = vmatpush1.msra.mxu0 0.0
    %1001 = vmatprep.subr.mxu0 0.0
    %1002 = vmatpush1.msra.mxu0 0.0
    %1003 = vmatprep.subr.mxu0 0.0
    %1004 = vmatpush1.msra.mxu0 0.0
    %1005 = vmatprep.subr.mxu0 0.0
    %1006 = vmatpush1.msra.mxu0 0.0
    %1007 = vmatprep.subr.mxu0 0.0
    %1008 = vmatpush1.msra.mxu0 0.0
    %1009 = vmatprep.subr.mxu0 0.0
    %1010 = vmatpush1.msra.mxu0 0.0
    %1011 = vmatprep.subr.mxu0 0.0
    %1012 = vmatpush1.msra.mxu0 %v976
    %1013 = vmatprep.subr.mxu0 0.0
    %1014 = vmatpush1.msra.mxu0 %v975
    %1015 = vmatprep.subr.mxu0 0.0
    %1016 = vmatpush2.msra.mxu0 0.0
    %1017 = vmatprep.subr.mxu0 0.0
    %1018 = vmatpush2.msra.mxu0 0.0
    %1019 = vmatprep.subr.mxu0 0.0
    %1020 = vmatpush2.msra.mxu0 0.0
    %1021 = vmatprep.subr.mxu0 0.0
    %1022 = vmatpush2.msra.mxu0 0.0
    %1023 = vmatprep.subr.mxu0 0.0
    %1024 = vmatpush2.msra.mxu0 0.0
    %1025 = vmatprep.subr.mxu0 0.0
    %1026 = vmatpush2.msra.mxu0 0.0
    %1027 = vmatprep.subr.mxu0 0.0
    %1028 = vmatpush2.msra.mxu0 0.0
    %1029 = vmatprep.subr.mxu0 0.0
    %1030 = vmatpush2.msra.mxu0 0.0
    %1031 = vmatprep.subr.mxu0 0.0
    %1032 = vmatpush2.msra.mxu0 0.0
    %1033 = vmatprep.subr.mxu0 0.0
    %1034 = vmatpush2.msra.mxu0 0.0
    %1035 = vmatprep.subr.mxu0 0.0
    %1036 = vmatpush2.msra.mxu0 0.0
    %1037 = vmatprep.subr.mxu0 0.0
    %1038 = vmatpush2.msra.mxu0 0.0
    %1039 = vmatprep.subr.mxu0 0.0
    %1040 = vmatpush2.msra.mxu0 0.0
    %1041 = vmatprep.subr.mxu0 0.0
    %1042 = vmatpush2.msra.mxu0 0.0
    %1043 = vmatprep.subr.mxu0 0.0
    %1044 = vmatpush2.msra.mxu0 0.0
    %1045 = vmatprep.subr.mxu0 0.0
    %1046 = vmatpush2.msra.mxu0 0.0
    %1047 = vmatprep.mubr.f32.mxu0 0.0
    %1048 = vmatmul.mubr.f32.gmra.mxu0 %v978
    %v1049 = vpop.f32.mrf.mxu0
    %v1050 = vadd.f32 0.0, %v1049
    %v1051 = vpop.f32.mrf.mxu0
    %1052 = vmatprep.mubr.f32.mxu0 0.0
    %1053 = vmatmul.mubr.f32.gmra.mxu0 %v981
    %v1054 = vpop.f32.mrf.mxu0
    %v1055 = vadd.f32 0.0, %v1054
    %v1056 = vpop.f32.mrf.mxu0
    %1057 = vdwg.mxu0
    %v1058 = vadd.f32 %v858, %v1050
    %v1059 = vadd.f32 %v859, %v1055
    %v1060 = vlaneseq
    %v1061 = vshrl.u32 %v1060, 7
    %v1062 = vsub.s32 2, %v1061
    %v1063 = vrot.slane %v70, %v1062
    %v1065 = vsel %vm266, %v1058, 0
    %v1068 = vsel %vm266, %v1059, 0
    %1070 = vmatprep.subr.mxu0 0.0
    %1071 = vmatpush1.msra.mxu0 0.0
    %1072 = vmatprep.subr.mxu0 0.0
    %1073 = vmatpush1.msra.mxu0 0.0
    %1074 = vmatprep.subr.mxu0 0.0
    %1075 = vmatpush1.msra.mxu0 0.0
    %1076 = vmatprep.subr.mxu0 0.0
    %1077 = vmatpush1.msra.mxu0 0.0
    %1078 = vmatprep.subr.mxu0 0.0
    %1079 = vmatpush1.msra.mxu0 0.0
    %1080 = vmatprep.subr.mxu0 0.0
    %1081 = vmatpush1.msra.mxu0 0.0
    %1082 = vmatprep.subr.mxu0 0.0
    %1083 = vmatpush1.msra.mxu0 0.0
    %1084 = vmatprep.subr.mxu0 0.0
    %1085 = vmatpush1.msra.mxu0 0.0
    %1086 = vmatprep.subr.mxu0 0.0
    %1087 = vmatpush1.msra.mxu0 %v49
    %1088 = vmatprep.subr.mxu0 0.0
    %1089 = vmatpush1.msra.mxu0 %v48
    %1090 = vmatprep.subr.mxu0 0.0
    %1091 = vmatpush1.msra.mxu0 %v47
    %1092 = vmatprep.subr.mxu0 0.0
    %1093 = vmatpush1.msra.mxu0 %v46
    %1094 = vmatprep.subr.mxu0 0.0
    %1095 = vmatpush1.msra.mxu0 %v45
    %1096 = vmatprep.subr.mxu0 0.0
    %1097 = vmatpush1.msra.mxu0 %v44
    %1098 = vmatprep.subr.mxu0 0.0
    %1099 = vmatpush1.msra.mxu0 %v43
    %1100 = vmatprep.subr.mxu0 0.0
    %1101 = vmatpush1.msra.mxu0 %v42
    %1102 = vmatprep.subr.mxu0 0.0
    %1103 = vmatpush2.msra.mxu0 0.0
    %1104 = vmatprep.subr.mxu0 0.0
    %1105 = vmatpush2.msra.mxu0 0.0
    %1106 = vmatprep.subr.mxu0 0.0
    %1107 = vmatpush2.msra.mxu0 0.0
    %1108 = vmatprep.subr.mxu0 0.0
    %1109 = vmatpush2.msra.mxu0 0.0
    %1110 = vmatprep.subr.mxu0 0.0
    %1111 = vmatpush2.msra.mxu0 0.0
    %1112 = vmatprep.subr.mxu0 0.0
    %1113 = vmatpush2.msra.mxu0 0.0
    %1114 = vmatprep.subr.mxu0 0.0
    %1115 = vmatpush2.msra.mxu0 0.0
    %1116 = vmatprep.subr.mxu0 0.0
    %1117 = vmatpush2.msra.mxu0 0.0
    %1118 = vmatprep.subr.mxu0 0.0
    %1119 = vmatpush2.msra.mxu0 0.0
    %1120 = vmatprep.subr.mxu0 0.0
    %1121 = vmatpush2.msra.mxu0 0.0
    %1122 = vmatprep.subr.mxu0 0.0
    %1123 = vmatpush2.msra.mxu0 0.0
    %1124 = vmatprep.subr.mxu0 0.0
    %1125 = vmatpush2.msra.mxu0 0.0
    %1126 = vmatprep.subr.mxu0 0.0
    %1127 = vmatpush2.msra.mxu0 0.0
    %1128 = vmatprep.subr.mxu0 0.0
    %1129 = vmatpush2.msra.mxu0 0.0
    %1130 = vmatprep.subr.mxu0 0.0
    %1131 = vmatpush2.msra.mxu0 0.0
    %1132 = vmatprep.subr.mxu0 0.0
    %1133 = vmatpush2.msra.mxu0 0.0
    %1134 = vmatprep.mubr.f32.mxu0 0.0
    %1135 = vmatmul.mubr.f32.gmra.mxu0 %v1065
    %v1136 = vpop.f32.mrf.mxu0
    %v1137 = vadd.f32 %v1063, %v1136
    %v1138 = vpop.f32.mrf.mxu0
    %1139 = vmatprep.mubr.f32.mxu0 0.0
    %1140 = vmatmul.mubr.f32.gmra.mxu0 %v1068
    %v1141 = vpop.f32.mrf.mxu0
    %v1142 = vadd.f32 %v1063, %v1141
    %v1143 = vpop.f32.mrf.mxu0
    %1144 = vdwg.mxu0
    %v1145 = vadd.f32 %v30, %v1137
    %v1146 = vadd.f32 %v31, %v1142
    %v1147 = vsel %vm76, %v1145, 0.0
    %1148 = vadd.xlane.f32.xlu0 %v1147
    %v1149 = vpop.xlane.xlu0 %1148
    %v1150 = vsel %vm76, %v1146, 0.0
    %1151 = vadd.xlane.f32.xlu0 %v1150
    %v1152 = vpop.xlane.xlu0 %1151
    %v1153 = vrcp.pop 32.0
    %v1154 = vmul.f32 %v1149, %v1153
    %v1155 = vmul.f32 %v1152, %v1153
    %v1156 = vsub.f32 %v1145, %v1154
    %v1157 = vsub.f32 %v1146, %v1155
    %v1158 = vmul.f32 %v1156, %v1156
    %v1159 = vmul.f32 %v1157, %v1157
    %v1160 = vsel %vm76, %v1158, 0.0
    %1161 = vadd.xlane.f32.xlu0 %v1160
    %v1162 = vpop.xlane.xlu0 %1161
    %v1163 = vsel %vm76, %v1159, 0.0
    %1164 = vadd.xlane.f32.xlu0 %v1163
    %v1165 = vpop.xlane.xlu0 %1164
    %v1166 = vmul.f32 %v1162, %v1153
    %v1167 = vmul.f32 %v1165, %v1153
    %v1168 = vadd.f32 %v1166, 1e-05
    %v1169 = vadd.f32 %v1167, 1e-05
    %v1170 = vrsqrt.pop %v1168
    %v1171 = vrsqrt.pop %v1169
    %v1172 = vmul.f32 %v1156, %v1170
    %v1173 = vmul.f32 %v1157, %v1171
    %v1174 = vlaneseq
    %v1175 = vshrl.u32 %v1174, 7
    %v1176 = vsub.s32 4, %v1175
    %v1177 = vrot.slane %v70, %v1176
    %v1178 = vmul.f32 %v1172, %v1177
    %v1179 = vmul.f32 %v1173, %v1177
    %v1180 = vlaneseq
    %v1181 = vshrl.u32 %v1180, 7
    %v1182 = vsub.s32 5, %v1181
    %v1183 = vrot.slane %v70, %v1182
    %v1184 = vadd.f32 %v1178, %v1183
    %v1185 = vadd.f32 %v1179, %v1183
    %v1186 = vlaneseq
    %v1187 = vshrl.u32 %v1186, 7
    %v1188 = vsub.s32 3, %v1187
    %v1189 = vrot.slane %v70, %v1188
    %v1191 = vsel %vm76, %v1184, 0
    %v1194 = vsel %vm76, %v1185, 0
    %1196 = vmatprep.subr.mxu0 0.0
    %1197 = vmatpush1.msra.mxu0 0.0
    %1198 = vmatprep.subr.mxu0 0.0
    %1199 = vmatpush1.msra.mxu0 0.0
    %1200 = vmatprep.subr.mxu0 0.0
    %1201 = vmatpush1.msra.mxu0 0.0
    %1202 = vmatprep.subr.mxu0 0.0
    %1203 = vmatpush1.msra.mxu0 0.0
    %1204 = vmatprep.subr.mxu0 0.0
    %1205 = vmatpush1.msra.mxu0 0.0
    %1206 = vmatprep.subr.mxu0 0.0
    %1207 = vmatpush1.msra.mxu0 0.0
    %1208 = vmatprep.subr.mxu0 0.0
    %1209 = vmatpush1.msra.mxu0 0.0
    %1210 = vmatprep.subr.mxu0 0.0
    %1211 = vmatpush1.msra.mxu0 0.0
    %1212 = vmatprep.subr.mxu0 0.0
    %1213 = vmatpush1.msra.mxu0 0.0
    %1214 = vmatprep.subr.mxu0 0.0
    %1215 = vmatpush1.msra.mxu0 0.0
    %1216 = vmatprep.subr.mxu0 0.0
    %1217 = vmatpush1.msra.mxu0 0.0
    %1218 = vmatprep.subr.mxu0 0.0
    %1219 = vmatpush1.msra.mxu0 0.0
    %1220 = vmatprep.subr.mxu0 0.0
    %1221 = vmatpush1.msra.mxu0 %v53
    %1222 = vmatprep.subr.mxu0 0.0
    %1223 = vmatpush1.msra.mxu0 %v52
    %1224 = vmatprep.subr.mxu0 0.0
    %1225 = vmatpush1.msra.mxu0 %v51
    %1226 = vmatprep.subr.mxu0 0.0
    %1227 = vmatpush1.msra.mxu0 %v50
    %1228 = vmatprep.subr.mxu0 0.0
    %1229 = vmatpush2.msra.mxu0 0.0
    %1230 = vmatprep.subr.mxu0 0.0
    %1231 = vmatpush2.msra.mxu0 0.0
    %1232 = vmatprep.subr.mxu0 0.0
    %1233 = vmatpush2.msra.mxu0 0.0
    %1234 = vmatprep.subr.mxu0 0.0
    %1235 = vmatpush2.msra.mxu0 0.0
    %1236 = vmatprep.subr.mxu0 0.0
    %1237 = vmatpush2.msra.mxu0 0.0
    %1238 = vmatprep.subr.mxu0 0.0
    %1239 = vmatpush2.msra.mxu0 0.0
    %1240 = vmatprep.subr.mxu0 0.0
    %1241 = vmatpush2.msra.mxu0 0.0
    %1242 = vmatprep.subr.mxu0 0.0
    %1243 = vmatpush2.msra.mxu0 0.0
    %1244 = vmatprep.subr.mxu0 0.0
    %1245 = vmatpush2.msra.mxu0 0.0
    %1246 = vmatprep.subr.mxu0 0.0
    %1247 = vmatpush2.msra.mxu0 0.0
    %1248 = vmatprep.subr.mxu0 0.0
    %1249 = vmatpush2.msra.mxu0 0.0
    %1250 = vmatprep.subr.mxu0 0.0
    %1251 = vmatpush2.msra.mxu0 0.0
    %1252 = vmatprep.subr.mxu0 0.0
    %1253 = vmatpush2.msra.mxu0 0.0
    %1254 = vmatprep.subr.mxu0 0.0
    %1255 = vmatpush2.msra.mxu0 0.0
    %1256 = vmatprep.subr.mxu0 0.0
    %1257 = vmatpush2.msra.mxu0 0.0
    %1258 = vmatprep.subr.mxu0 0.0
    %1259 = vmatpush2.msra.mxu0 0.0
    %1260 = vmatprep.mubr.f32.mxu0 0.0
    %1261 = vmatmul.mubr.f32.gmra.mxu0 %v1191
    %v1262 = vpop.f32.mrf.mxu0
    %v1263 = vadd.f32 %v1189, %v1262
    %v1264 = vpop.f32.mrf.mxu0
    %1265 = vmatprep.mubr.f32.mxu0 0.0
    %1266 = vmatmul.mubr.f32.gmra.mxu0 %v1194
    %v1267 = vpop.f32.mrf.mxu0
    %v1268 = vadd.f32 %v1189, %v1267
    %v1269 = vpop.f32.mrf.mxu0
    %1270 = vdwg.mxu0
    %v1271 = vmax.f32 %v1263, 0.0
    %v1272 = vmax.f32 %v1268, 0.0
    %v1273 = vlaneseq
    %v1274 = vshrl.u32 %v1273, 7
    %v1275 = vsub.s32 6, %v1274
    %v1276 = vrot.slane %v70, %v1275
    %1277 = vmatprep.subr.mxu0 0.0
    %1278 = vmatpush1.msra.mxu0 %v69
    %1279 = vmatprep.subr.mxu0 0.0
    %1280 = vmatpush1.msra.mxu0 %v68
    %1281 = vmatprep.subr.mxu0 0.0
    %1282 = vmatpush1.msra.mxu0 %v67
    %1283 = vmatprep.subr.mxu0 0.0
    %1284 = vmatpush1.msra.mxu0 %v66
    %1285 = vmatprep.subr.mxu0 0.0
    %1286 = vmatpush1.msra.mxu0 %v65
    %1287 = vmatprep.subr.mxu0 0.0
    %1288 = vmatpush1.msra.mxu0 %v64
    %1289 = vmatprep.subr.mxu0 0.0
    %1290 = vmatpush1.msra.mxu0 %v63
    %1291 = vmatprep.subr.mxu0 0.0
    %1292 = vmatpush1.msra.mxu0 %v62
    %1293 = vmatprep.subr.mxu0 0.0
    %1294 = vmatpush1.msra.mxu0 %v61
    %1295 = vmatprep.subr.mxu0 0.0
    %1296 = vmatpush1.msra.mxu0 %v60
    %1297 = vmatprep.subr.mxu0 0.0
    %1298 = vmatpush1.msra.mxu0 %v59
    %1299 = vmatprep.subr.mxu0 0.0
    %1300 = vmatpush1.msra.mxu0 %v58
    %1301 = vmatprep.subr.mxu0 0.0
    %1302 = vmatpush1.msra.mxu0 %v57
    %1303 = vmatprep.subr.mxu0 0.0
    %1304 = vmatpush1.msra.mxu0 %v56
    %1305 = vmatprep.subr.mxu0 0.0
    %1306 = vmatpush1.msra.mxu0 %v55
    %1307 = vmatprep.subr.mxu0 0.0
    %1308 = vmatpush1.msra.mxu0 %v54
    %1309 = vmatprep.subr.mxu0 0.0
    %1310 = vmatpush2.msra.mxu0 0.0
    %1311 = vmatprep.subr.mxu0 0.0
    %1312 = vmatpush2.msra.mxu0 0.0
    %1313 = vmatprep.subr.mxu0 0.0
    %1314 = vmatpush2.msra.mxu0 0.0
    %1315 = vmatprep.subr.mxu0 0.0
    %1316 = vmatpush2.msra.mxu0 0.0
    %1317 = vmatprep.subr.mxu0 0.0
    %1318 = vmatpush2.msra.mxu0 0.0
    %1319 = vmatprep.subr.mxu0 0.0
    %1320 = vmatpush2.msra.mxu0 0.0
    %1321 = vmatprep.subr.mxu0 0.0
    %1322 = vmatpush2.msra.mxu0 0.0
    %1323 = vmatprep.subr.mxu0 0.0
    %1324 = vmatpush2.msra.mxu0 0.0
    %1325 = vmatprep.subr.mxu0 0.0
    %1326 = vmatpush2.msra.mxu0 0.0
    %1327 = vmatprep.subr.mxu0 0.0
    %1328 = vmatpush2.msra.mxu0 0.0
    %1329 = vmatprep.subr.mxu0 0.0
    %1330 = vmatpush2.msra.mxu0 0.0
    %1331 = vmatprep.subr.mxu0 0.0
    %1332 = vmatpush2.msra.mxu0 0.0
    %1333 = vmatprep.subr.mxu0 0.0
    %1334 = vmatpush2.msra.mxu0 0.0
    %1335 = vmatprep.subr.mxu0 0.0
    %1336 = vmatpush2.msra.mxu0 0.0
    %1337 = vmatprep.subr.mxu0 0.0
    %1338 = vmatpush2.msra.mxu0 0.0
    %1339 = vmatprep.subr.mxu0 0.0
    %1340 = vmatpush2.msra.mxu0 0.0
    %1341 = vmatprep.mubr.f32.mxu0 0.0
    %1342 = vmatmul.mubr.f32.gmra.mxu0 %v1271
    %v1343 = vpop.f32.mrf.mxu0
    %v1344 = vadd.f32 %v1276, %v1343
    %v1345 = vpop.f32.mrf.mxu0
    %1346 = vmatprep.mubr.f32.mxu0 0.0
    %1347 = vmatmul.mubr.f32.gmra.mxu0 %v1272
    %v1348 = vpop.f32.mrf.mxu0
    %v1349 = vadd.f32 %v1276, %v1348
    %v1350 = vpop.f32.mrf.mxu0
    %1351 = vdwg.mxu0
    %v1352 = vadd.f32 %v1184, %v1344
    %v1353 = vadd.f32 %v1185, %v1349
    %v1354 = vsel %vm76, %v1352, 0.0
    %1355 = vadd.xlane.f32.xlu0 %v1354
    %v1356 = vpop.xlane.xlu0 %1355
    %v1357 = vsel %vm76, %v1353, 0.0
    %1358 = vadd.xlane.f32.xlu0 %v1357
    %v1359 = vpop.xlane.xlu0 %1358
    %v1360 = vmul.f32 %v1356, %v1153
    %v1361 = vmul.f32 %v1359, %v1153
    %v1362 = vsub.f32 %v1352, %v1360
    %v1363 = vsub.f32 %v1353, %v1361
    %v1364 = vmul.f32 %v1362, %v1362
    %v1365 = vmul.f32 %v1363, %v1363
    %v1366 = vsel %vm76, %v1364, 0.0
    %1367 = vadd.xlane.f32.xlu0 %v1366
    %v1368 = vpop.xlane.xlu0 %1367
    %v1369 = vsel %vm76, %v1365, 0.0
    %1370 = vadd.xlane.f32.xlu0 %v1369
    %v1371 = vpop.xlane.xlu0 %1370
    %v1372 = vmul.f32 %v1368, %v1153
    %v1373 = vmul.f32 %v1371, %v1153
    %v1374 = vadd.f32 %v1372, 1e-05
    %v1375 = vadd.f32 %v1373, 1e-05
    %v1376 = vrsqrt.pop %v1374
    %v1377 = vrsqrt.pop %v1375
    %v1378 = vmul.f32 %v1362, %v1376
    %v1379 = vmul.f32 %v1363, %v1377
    %v1380 = vlaneseq
    %v1381 = vshrl.u32 %v1380, 7
    %v1382 = vsub.s32 7, %v1381
    %v1383 = vrot.slane %v70, %v1382
    %v1384 = vmul.f32 %v1378, %v1383
    %v1385 = vmul.f32 %v1379, %v1383
    %v1386 = vlaneseq
    %v1387 = vshrl.u32 %v1386, 7
    %v1388 = vsub.s32 0, %v1387
    %v1389 = vrot.slane %v71, %v1388
    %v1390 = vadd.f32 %v1384, %v1389
    %v1391 = vadd.f32 %v1385, %v1389
    %1392 = vst.msk [vmem:[#allocation2] sm:$0xff] %vm76, %v1390
    %1393 = vst.msk [vmem:[#allocation2 + $0x8] sm:$0xff] %vm76, %v1391
    // Predicated region
    $region34: #{cross_transformer.1} parent=1 // pred_check
      _
    $region35: #{cross_transformer.1} parent=1 // pred_check_branch
      %1395 = sbr.rel (0) target = $region37
    $region36: #{cross_transformer.1} parent=1 // pred_region
      %s1397 = ssub.s32 256, 256
      %1398 = vsyncadd [#allocation3], %s1397
      %s1399 = sshll.u32 [#allocation2], 4
      %s1400 = int_to_ptr.vmem [resolvable:$true] %s1399
      %1405 = dma.vmem_to_hbm [thread:$0]  %s1400, 256, %s8, [#allocation3], 128, 128, 8
    $region37: #{cross_transformer.1} parent=1 // pred_fallthru
      _
    // Predicated region
    $region38: #{cross_transformer.1} parent=1 // pred_check
      _
    $region39: #{cross_transformer.1} parent=1 // pred_check_branch
      %1407 = sbr.rel (0) target = $region41
    $region40: #{cross_transformer.1} parent=1 // pred_region
      %1408 = dma.done [#allocation3], 256
    $region41: #{cross_transformer.1} parent=1 // pred_fallthru
      _
    %1409 = vsyncpa [#allocation3], 1

</llo_original>
